<compile_context>
chip_gen: v5e
topology: v5e:2x2
jax: 0.10.0
libtpu: 0.0.40
codegen_flags: <defaults>
</compile_context>

<pallas_src>
import functools

import jax
import jax.numpy as jnp
from jax.experimental import pallas as pl
from jax.experimental.pallas import tpu as pltpu

# Below this many output elements a single fused XLA elementwise beats any
# kernel launch (review item 2).
_FAST_PATH_MAX_ELEMS = 64 * 1024
# Per-sample spatial block cap (input block bytes).  4 MiB/block keeps the
# double-buffered in+out footprint (~16 MiB) inside every generation's scoped
# VMEM budget (v5e/v6e defaults 16/32 MiB, v7x physical 64 MiB).
_MAX_SPATIAL_BLOCK_BYTES = 4 * 1024 * 1024


def _affine_sigmoid_crop_kernel(w_ref, b_ref, x_ref, o_ref, *, ph, pw, h, w):
    # w_ref, b_ref: (1,) scalars in SMEM.
    # x_ref: (1, 1, H, W) VMEM block (one batch sample, full spatial extent).
    # o_ref: (1, 1, Ho, Wo) VMEM block (natural output layout).
    scale = w_ref[0]
    shift = b_ref[0]
    xc = x_ref[0, 0, ph:h - ph, pw:w - pw]          # static interior crop
    o_ref[0, 0, :, :] = jax.nn.sigmoid(xc * scale + shift).astype(o_ref.dtype)


def conv_transpose_1x1_sigmoid(x, weight, bias, padding):
    """sigmoid(ConvTranspose2d(1, 1, kernel_size=1, stride=1, padding)(x)).

    x:      (N, 1, H, W) float32   (NCHW, as in PyTorch)
    weight: (1, 1, 1, 1) float32   (C_in, C_out, kH, kW)
    bias:   (1,)         float32
    """
    n, c, h, w = x.shape
    assert c == 1, "module is ConvTranspose2d(1, 1, ...)"
    ph, pw = padding
    ho = h - 2 * ph
    wo = w - 2 * pw
    if ho <= 0 or wo <= 0:
        raise ValueError(
            f"ConvTranspose2d output size ({ho}x{wo}) is non-positive; "
            "PyTorch rejects this configuration at runtime.")

    w_s = weight.reshape(1).astype(jnp.float32)
    b_s = bias.reshape(1).astype(jnp.float32)
    total = n * ho * wo

    # Small-size fast path: skip the kernel entirely for tiny tensors.
    if total < _FAST_PATH_MAX_ELEMS:
        return jax.nn.sigmoid(x[:, :, ph:h - ph, pw:w - pw] * w_s[0] + b_s[0])

    # TODO(synk): for pathologically large single images (> 4 MiB of spatial
    # data per sample) tile the H axis inside the kernel; the element-offset
    # index_map needed for an arbitrary crop offset is omitted for robustness,
    # so we fall back to the fused XLA elementwise there.
    if h * w * x.dtype.itemsize > _MAX_SPATIAL_BLOCK_BYTES:
        return jax.nn.sigmoid(x[:, :, ph:h - ph, pw:w - pw] * w_s[0] + b_s[0])

    kernel = functools.partial(
        _affine_sigmoid_crop_kernel, ph=ph, pw=pw, h=h, w=w)

    cost = pl.CostEstimate(
        flops=2 * total,
        transcendentals=total,
        bytes_accessed=x.dtype.itemsize * (n * h * w + total),
    )

    return pl.pallas_call(
        kernel,
        out_shape=jax.ShapeDtypeStruct((n, 1, ho, wo), x.dtype),
        grid=(n,),
        in_specs=[
            pl.BlockSpec(memory_space=pltpu.MemorySpace.SMEM),   # weight scalar
            pl.BlockSpec(memory_space=pltpu.MemorySpace.SMEM),   # bias scalar
            pl.BlockSpec((1, 1, h, w), lambda i: (i, 0, 0, 0)),
        ],
        # Last two dims equal the full output dims, so an un-aligned Wo is OK.
        out_specs=pl.BlockSpec((1, 1, ho, wo), lambda i: (i, 0, 0, 0)),
        compiler_params=pltpu.CompilerParams(
            dimension_semantics=("parallel",),          # megacore over batch
            vmem_limit_bytes=32 * 1024 * 1024,
        ),
        cost_estimate=cost,
    )(w_s, b_s, x)


def _reference(x, weight, bias, padding):
    ph, pw = padding
    h, w = x.shape[2], x.shape[3]
    return jax.nn.sigmoid(
        x[:, :, ph:h - ph, pw:w - pw] * weight[0, 0, 0, 0] + bias[0])


if __name__ == "__main__":
    key = jax.random.PRNGKey(0)
    kx, kw, kb, kx2, kx3 = jax.random.split(key, 5)

    # Input matching the test program: x1 = torch.randn(1, 1, 6, 6)
    x1 = jax.random.normal(kx, (1, 1, 6, 6), dtype=jnp.float32)

    # ConvTranspose2d(1, 1, 1) params: weight (C_in, C_out, 1, 1), bias (C_out,).
    # PyTorch default init is U(-sqrt(k), sqrt(k)) with k = 1/(C_in*kH*kW) = 1.
    weight = jax.random.uniform(kw, (1, 1, 1, 1), minval=-1.0, maxval=1.0,
                                dtype=jnp.float32)
    bias = jax.random.uniform(kb, (1,), minval=-1.0, maxval=1.0,
                              dtype=jnp.float32)

    # TODO(synk): the original module uses padding=(10000, 10000), which gives a
    # negative output size for a 6x6 input and makes PyTorch's forward raise
    # ("Output size is too small"); we keep the same kernel semantics but run
    # with a valid small padding instead.
    padding = (2, 2)

    # Original-size input (hits the small-size XLA fast path).
    out = conv_transpose_1x1_sigmoid(x1, weight, bias, padding)
    jax.block_until_ready(out)
    ref = _reference(x1, weight, bias, padding)
    assert out.shape == (1, 1, 2, 2)
    assert jnp.allclose(out, ref, atol=1e-5), "mismatch vs. reference (small)"

    # Mid-size input (still below the fast-path threshold by design).
    x_mid = jax.random.normal(kx2, (2, 1, 64, 64), dtype=jnp.float32)
    out_mid = conv_transpose_1x1_sigmoid(x_mid, weight, bias, padding)
    jax.block_until_ready(out_mid)
    ref_mid = _reference(x_mid, weight, bias, padding)
    assert out_mid.shape == (2, 1, 60, 60)
    assert jnp.allclose(out_mid, ref_mid, atol=1e-5), "mismatch vs. reference (mid)"

    # Larger input that exercises the Pallas path: grid over batch (2 parallel
    # steps => both v7x TensorCores), in-kernel crop, natural-layout output.
    x_big = jax.random.normal(kx3, (2, 1, 256, 256), dtype=jnp.float32)
    out_big = conv_transpose_1x1_sigmoid(x_big, weight, bias, padding)
    jax.block_until_ready(out_big)
    ref_big = _reference(x_big, weight, bias, padding)
    assert out_big.shape == (2, 1, 252, 252)
    assert jnp.allclose(out_big, ref_big, atol=1e-5), "mismatch vs. reference (large)"

    print("KERNEL_OK")
</pallas_src>

<mosaic_0001>
module attributes {stable_mosaic.version = 11 : i64} {
  func.func @_affine_sigmoid_crop_kernel(%arg0: i32, %arg1: memref<1xf32, #tpu.memory_space<smem>>, %arg2: memref<1xf32, #tpu.memory_space<smem>>, %arg3: memref<1x1x256x256xf32, #tpu.memory_space<vmem>>, %arg4: memref<1x1x252x252xf32, #tpu.memory_space<vmem>>) attributes {dimension_semantics = [#tpu.dimension_semantics<parallel>], iteration_bounds = array<i64: 2>, scalar_prefetch = 0 : i64, scratch_operands = 0 : i64, tpu.core_type = #tpu.core_type<tc>, window_params = [{transform_indices = @transform_0, window_bounds = array<i64: 1>}, {transform_indices = @transform_1, window_bounds = array<i64: 1>}, {transform_indices = @transform_2, window_bounds = array<i64: 1, 1, 256, 256>}, {transform_indices = @transform_3, window_bounds = array<i64: 1, 1, 252, 252>}]} {
    %c0 = arith.constant 0 : index
    %0 = memref.load %arg1[%c0] : memref<1xf32, #tpu.memory_space<smem>>
    %c0_0 = arith.constant 0 : index
    %1 = memref.load %arg2[%c0_0] : memref<1xf32, #tpu.memory_space<smem>>
    %c0_1 = arith.constant 0 : index
    %c0_2 = arith.constant 0 : index
    %c2 = arith.constant 2 : index
    %c2_3 = arith.constant 2 : index
    %2 = vector.load %arg3[%c0_1, %c0_2, %c2, %c2_3] : memref<1x1x256x256xf32, #tpu.memory_space<vmem>>, vector<1x1x252x252xf32>
    %3 = vector.shape_cast %2 : vector<1x1x252x252xf32> to vector<252x252xf32>
    %4 = vector.broadcast %0 : f32 to vector<252x252xf32>
    %5 = arith.mulf %3, %4 : vector<252x252xf32>
    %6 = vector.broadcast %1 : f32 to vector<252x252xf32>
    %7 = arith.addf %5, %6 : vector<252x252xf32>
    %8 = arith.negf %7 : vector<252x252xf32>
    %9 = math.exp %8 : vector<252x252xf32>
    %cst = arith.constant 1.000000e+00 : f32
    %10 = vector.broadcast %cst : f32 to vector<252x252xf32>
    %11 = arith.addf %10, %9 : vector<252x252xf32>
    %12 = arith.divf %10, %11 : vector<252x252xf32>
    %c0_4 = arith.constant 0 : index
    %c0_5 = arith.constant 0 : index
    %c0_6 = arith.constant 0 : index
    %c0_7 = arith.constant 0 : index
    %13 = vector.load %arg4[%c0_4, %c0_5, %c0_6, %c0_7] : memref<1x1x252x252xf32, #tpu.memory_space<vmem>>, vector<1x1x252x252xf32>
    %14 = vector.shape_cast %13 : vector<1x1x252x252xf32> to vector<252x252xf32>
    %15 = vector.shape_cast %12 : vector<252x252xf32> to vector<1x1x252x252xf32>
    tpu.vector_store %arg4[%c0_4, %c0_5, %c0_6, %c0_7], %15 {strides = array<i32>} : memref<1x1x252x252xf32, #tpu.memory_space<vmem>>, vector<1x1x252x252xf32>,
    return
  }
  func.func @transform_0(%arg0: i32) -> i32 {
    %c0_i32 = arith.constant 0 : i32
    %c0_i32_0 = arith.constant 0 : i32
    return %c0_i32 : i32
  }
  func.func @transform_1(%arg0: i32) -> i32 {
    %c0_i32 = arith.constant 0 : i32
    %c0_i32_0 = arith.constant 0 : i32
    return %c0_i32 : i32
  }
  func.func @transform_2(%arg0: i32) -> (i32, i32, i32, i32) {
    %c0_i32 = arith.constant 0 : i32
    %c0_i32_0 = arith.constant 0 : i32
    %c0_i32_1 = arith.constant 0 : i32
    %c0_i32_2 = arith.constant 0 : i32
    return %arg0, %c0_i32, %c0_i32_0, %c0_i32_1 : i32, i32, i32, i32
  }
  func.func @transform_3(%arg0: i32) -> (i32, i32, i32, i32) {
    %c0_i32 = arith.constant 0 : i32
    %c0_i32_0 = arith.constant 0 : i32
    %c0_i32_1 = arith.constant 0 : i32
    %c0_i32_2 = arith.constant 0 : i32
    return %arg0, %c0_i32, %c0_i32_0, %c0_i32_1 : i32, i32, i32, i32
  }
}

</mosaic_0001>

<llo_original>
// kernel: tpu_custom_call.1
$region0: #{tpu_custom_call.1}
  #allocation0 [shape = 'u32[]', space=smem, size = 0x4, offset = 0x4, fixed_abs, tag = 'smem constant byte address 0x4 - core index']
  #allocation1 [shape = 'u32[72,128]{1,0:T(1,128)}', space=vmem, size = 0x9000, scoped, tag = 'internal scratch']
  #allocation2 [shape = 'f32[1]{0:T(128)S(6)}', space=smem, size = 0x200, scoped, tag = 'scoped memory for tpu_custom_call.1']
  #allocation3 [shape = 'f32[1]{0:T(128)S(6)}', space=smem, size = 0x200, scoped, tag = 'scoped memory for tpu_custom_call.1']
  %s0 = inlined_call_operand.<no memory space> [shape: f32[1], index: 0, kind: input, shape index: {}]
  %s1 = inlined_call_operand.<no memory space> [shape: f32[1], index: 1, kind: input, shape index: {}]
  %s2 = inlined_call_operand.hbm [shape: f32[2,1,256,256], index: 2, kind: input, shape index: {}]
  %s3 = inlined_call_operand.vmem [shape: f32[2,1,252,252], index: 3, kind: output, shape index: {}]
  %s4 = sld [smem:[#allocation0]]
  $region49: #{tpu_custom_call.1} parent=0
    _
  %s6 = ssub.s32 1, %s4
  %s7 = scalar_select 0, %s6, %s4
  %8 = sst [smem:[#allocation2]] %s0
  %9 = sst [smem:[#allocation3]] %s1
  $region1: #{tpu_custom_call.1} parent=0
    #allocation4 [shape = 'u8[524288]{0}', space=vmem, size = 0x80000, scoped, tag = 'input window, operand 2']
    #allocation5 [shape = 's32[2]{0}', space=sflag, size = 0x8, scoped, tag = 'scoped memory for tpu_custom_call.1']
    %10 = vsyncpa [#allocation5], 0
    %s11 = scalar_lea.sflag [#allocation5], 1
    %12 = vsyncpa %s11, 0
    loop: start=0, step=1, limit=4
    $region2: #{tpu_custom_call.1} parent=1 // loop_pre_header
      _
    $region3: #{tpu_custom_call.1} parent=1 // loop_header
      %s14 = sphi 0, %s18
      %p15 = scmp.ge.s32.totalorder %s14, 4
      %s22 = sphi 0, %s22
      %s24 = sphi 0, %s22
      %s25 = sphi 0, %s24
      %s39 = sphi 0, %s25
      %s43 = sphi 0, %s43
      %s45 = sphi 0, %s43
      %s46 = sphi 0, %s45
      %s60 = sphi 0, %s46
      %s66 = sphi 0, %s68
      %s69 = sphi 0, %s66
      %s70 = sphi 0, %s69
      %s86 = sphi 0, %s70
      %s92 = sphi 0, %s94
      %s95 = sphi 0, %s92
      %s96 = sphi 0, %s95
      %s112 = sphi 0, %s96
    $region4: #{tpu_custom_call.1} parent=1 // loop_header_branch
      %17 = sbr.rel (%p15) target = $region8
    $region5: #{tpu_custom_call.1} parent=1 // loop_body
      %s19 = ssub.s32 %s14, 1
      %s20 = ssub.s32 %s14, 2
      %s21 = sadd.s32 %s14, 1
      %s23 = sadd.s32 %s22, 1
      %p26 = scmp.eq.s32.totalorder %s14, 1
      %p27 = scmp.ne.s32.totalorder %s22, %s24
      %p28 = scmp.eq.s32.totalorder %s14, 0
      %p29 = por %p27, %p28
      %p30 = scmp.ne.s32.totalorder %s22, %s24
      %p31 = scmp.eq.s32.totalorder %s19, 1
      %p32 = por %p30, %p31
      %p33 = scmp.ne.s32.totalorder %s24, %s25
      %p34 = scmp.eq.s32.totalorder %s19, 0
      %p35 = por %p33, %p34
      %p36 = scmp.ne.s32.totalorder %s24, %s25
      %p37 = scmp.eq.s32.totalorder %s20, 1
      %p38 = por %p36, %p37
      %p40 = scmp.ne.s32.totalorder %s25, %s39
      %p41 = scmp.eq.s32.totalorder %s20, 0
      %p42 = por %p40, %p41
      %s44 = sadd.s32 %s43, 1
      %p47 = scmp.eq.s32.totalorder %s14, 1
      %p48 = scmp.ne.s32.totalorder %s43, %s45
      %p49 = scmp.eq.s32.totalorder %s14, 0
      %p50 = por %p48, %p49
      %p51 = scmp.ne.s32.totalorder %s43, %s45
      %p52 = scmp.eq.s32.totalorder %s19, 1
      %p53 = por %p51, %p52
      %p54 = scmp.ne.s32.totalorder %s45, %s46
      %p55 = scmp.eq.s32.totalorder %s19, 0
      %p56 = por %p54, %p55
      %p57 = scmp.ne.s32.totalorder %s45, %s46
      %p58 = scmp.eq.s32.totalorder %s20, 1
      %p59 = por %p57, %p58
      %p61 = scmp.ne.s32.totalorder %s46, %s60
      %p62 = scmp.eq.s32.totalorder %s20, 0
      %p63 = por %p61, %p62
      %s64 = ssub.s32 %s14, %s21
      %p65 = scmp.eq.s32.totalorder %s64, 0
      %s67 = sadd.s32 %s66, 1
      %s68 = scalar_select %p65, %s66, %s67
      %p71 = pneg %p65
      %p72 = scmp.eq.s32.totalorder %s14, 1
      %p73 = por %p71, %p72
      %p74 = scmp.ne.s32.totalorder %s66, %s69
      %p75 = scmp.eq.s32.totalorder %s14, 0
      %p76 = por %p74, %p75
      %p77 = scmp.ne.s32.totalorder %s66, %s69
      %p78 = scmp.eq.s32.totalorder %s19, 1
      %p79 = por %p77, %p78
      %p80 = scmp.ne.s32.totalorder %s69, %s70
      %p81 = scmp.eq.s32.totalorder %s19, 0
      %p82 = por %p80, %p81
      %p83 = scmp.ne.s32.totalorder %s69, %s70
      %p84 = scmp.eq.s32.totalorder %s20, 1
      %p85 = por %p83, %p84
      %p87 = scmp.ne.s32.totalorder %s70, %s86
      %p88 = scmp.eq.s32.totalorder %s20, 0
      %p89 = por %p87, %p88
      %s90 = ssub.s32 %s14, %s21
      %p91 = scmp.eq.s32.totalorder %s90, 0
      %s93 = sadd.s32 %s92, 1
      %s94 = scalar_select %p91, %s92, %s93
      %p97 = pneg %p91
      %p98 = scmp.eq.s32.totalorder %s14, 1
      %p99 = por %p97, %p98
      %p100 = scmp.ne.s32.totalorder %s92, %s95
      %p101 = scmp.eq.s32.totalorder %s14, 0
      %p102 = por %p100, %p101
      %p103 = scmp.ne.s32.totalorder %s92, %s95
      %p104 = scmp.eq.s32.totalorder %s19, 1
      %p105 = por %p103, %p104
      %p106 = scmp.ne.s32.totalorder %s95, %s96
      %p107 = scmp.eq.s32.totalorder %s19, 0
      %p108 = por %p106, %p107
      %p109 = scmp.ne.s32.totalorder %s95, %s96
      %p110 = scmp.eq.s32.totalorder %s20, 1
      %p111 = por %p109, %p110
      %p113 = scmp.ne.s32.totalorder %s96, %s112
      %p114 = scmp.eq.s32.totalorder %s20, 0
      %p115 = por %p113, %p114
      %p116 = scmp.le.s32.totalorder 1, %s14
      %p117 = scmp.lt.s32.totalorder %s14, 3
      %p118 = pnand %p116, %p117
      %p119 = pneg %p118
      // Predicated region
      $region9: #{tpu_custom_call.1} parent=5 // pred_check
        _
      $region10: #{tpu_custom_call.1} parent=5 // pred_check_branch
        %121 = sbr.rel (%p118) target = $region12
      $region11: #{tpu_custom_call.1} parent=5 // pred_region
        %s122 = ssub.s32 %s14, 1
        // Predicated region
        $region13: #{tpu_custom_call.1} parent=11 // pred_check
          %p123 = pneg %p35
        $region14: #{tpu_custom_call.1} parent=11 // pred_check_branch
          %125 = sbr.rel (%p123) target = $region16
        $region15: #{tpu_custom_call.1} parent=11 // pred_region
          _
        $region16: #{tpu_custom_call.1} parent=11 // pred_fallthru
          _
        // Predicated region
        $region17: #{tpu_custom_call.1} parent=11 // pred_check
          %p126 = pneg %p56
        $region18: #{tpu_custom_call.1} parent=11 // pred_check_branch
          %128 = sbr.rel (%p126) target = $region20
        $region19: #{tpu_custom_call.1} parent=11 // pred_region
          _
        $region20: #{tpu_custom_call.1} parent=11 // pred_fallthru
          _
      $region12: #{tpu_custom_call.1} parent=5 // pred_fallthru
        _
      %p129 = scmp.lt.s32.totalorder %s14, 2
      // Predicated region
      $region21: #{tpu_custom_call.1} parent=5 // pred_check
        %p130 = pneg %p129
      $region22: #{tpu_custom_call.1} parent=5 // pred_check_branch
        %132 = sbr.rel (%p130) target = $region24
      $region23: #{tpu_custom_call.1} parent=5 // pred_region
        // Predicated region
        $region25: #{tpu_custom_call.1} parent=23 // pred_check
          %p133 = pneg %p76
        $region26: #{tpu_custom_call.1} parent=23 // pred_check_branch
          %135 = sbr.rel (%p133) target = $region28
        $region27: #{tpu_custom_call.1} parent=23 // pred_region
          %s136 = sand.u32 %s66, 1
          %s137 = scalar_lea.sflag [#allocation5], %s136
          %s138 = sand.u32 %s66, 1
          %s139 = smul.addr %s138, 512
          %s140 = scalar_lea.vmem [#allocation4], %s139
          %142 = vsyncadd %s137, 0
          %s143 = smul.addr %s14, 64
          %s144 = smul.addr %s143, 8
          %s145 = scalar_lea.hbm %s2, %s144
          %s146 = sshll.u32 %s145, 4
          %s147 = int_to_ptr.hbm [resolvable:$true] %s146
          %s148 = sshll.u32 %s140, 4
          %s149 = int_to_ptr.vmem [resolvable:$true] %s148
          %154 = dma.hbm_to_vmem [thread:$0]  %s147, 8192, %s149, %s137, 256, 256, 16
        $region28: #{tpu_custom_call.1} parent=23 // pred_fallthru
          _
      $region24: #{tpu_custom_call.1} parent=5 // pred_fallthru
        _
      %p155 = scmp.le.s32.totalorder 1, %s14
      %p156 = scmp.lt.s32.totalorder %s14, 3
      %p157 = pnand %p155, %p156
      %p158 = pneg %p157
      // Predicated region
      $region29: #{tpu_custom_call.1} parent=5 // pred_check
        _
      $region30: #{tpu_custom_call.1} parent=5 // pred_check_branch
        %160 = sbr.rel (%p157) target = $region32
      $region31: #{tpu_custom_call.1} parent=5 // pred_region
        %s161 = ssub.s32 %s14, 1
        %s162 = sand.u32 %s69, 1
        %s163 = scalar_lea.sflag [#allocation5], %s162
        %s164 = sand.u32 %s69, 1
        %s165 = smul.addr %s164, 512
        %s166 = scalar_lea.vmem [#allocation4], %s165
        // Predicated region
        $region33: #{tpu_custom_call.1} parent=31 // pred_check
          %p167 = pneg %p82
        $region34: #{tpu_custom_call.1} parent=31 // pred_check_branch
          %169 = sbr.rel (%p167) target = $region36
        $region35: #{tpu_custom_call.1} parent=31 // pred_region
          %171 = dma.done %s163, 8192
        $region36: #{tpu_custom_call.1} parent=31 // pred_fallthru
          _
        %p172 = pneg %p35
        %p173 = pneg %p32
        %p174 = pneg %p56
        %p175 = pneg %p53
        %s176 = sand.u32 %s69, 1
        %s177 = scalar_lea.sflag [#allocation5], %s176
        %s178 = sand.u32 %s69, 1
        %s179 = smul.addr %s178, 512
        %s180 = scalar_lea.vmem [#allocation4], %s179
        %p181 = pneg %p82
        %p182 = pneg %p79
        %p183 = pneg %p108
        %p184 = pneg %p105
        %p185 = scmp.lt.s32.totalorder %s19, 1
        %s186 = scalar_select %p185, %s19, 1
        %s187 = smul.addr %s186, 64
        %s188 = smul.addr %s187, 8
        %s189 = scalar_lea.vmem %s3, %s188
        %p190 = scmp.lt.s32.totalorder %s19, 1
        %s191 = scalar_select %p190, %s19, 1
        %s192 = smul.addr %s191, 64
        %s193 = smul.addr %s192, 8
        %s194 = scalar_lea.vmem %s3, %s193
        %s195 = sld [smem:[#allocation2]]
        %s196 = sld [smem:[#allocation3]]
        %v197 = vld [vmem:[%s166] sm:$0xfc]
        %v198 = vld [vmem:[%s166 + $0x8] sm:$0xfc]
        %v199 = vld [vmem:[%s166 + $0x10] sm:$0xff]
        %v200 = vld [vmem:[%s166 + $0x18] sm:$0xff]
        %v201 = vld [vmem:[%s166 + $0x20] sm:$0xff]
        %v202 = vld [vmem:[%s166 + $0x28] sm:$0xff]
        %v203 = vld [vmem:[%s166 + $0x30] sm:$0xff]
        %v204 = vld [vmem:[%s166 + $0x38] sm:$0xff]
        %v205 = vld [vmem:[%s166 + $0x40] sm:$0xff]
        %v206 = vld [vmem:[%s166 + $0x48] sm:$0xff]
        %v207 = vld [vmem:[%s166 + $0x50] sm:$0xff]
        %v208 = vld [vmem:[%s166 + $0x58] sm:$0xff]
        %v209 = vld [vmem:[%s166 + $0x60] sm:$0xff]
        %v210 = vld [vmem:[%s166 + $0x68] sm:$0xff]
        %v211 = vld [vmem:[%s166 + $0x70] sm:$0xff]
        %v212 = vld [vmem:[%s166 + $0x78] sm:$0xff]
        %v213 = vld [vmem:[%s166 + $0x80] sm:$0xff]
        %v214 = vld [vmem:[%s166 + $0x88] sm:$0xff]
        %v215 = vld [vmem:[%s166 + $0x90] sm:$0xff]
        %v216 = vld [vmem:[%s166 + $0x98] sm:$0xff]
        %v217 = vld [vmem:[%s166 + $0xa0] sm:$0xff]
        %v218 = vld [vmem:[%s166 + $0xa8] sm:$0xff]
        %v219 = vld [vmem:[%s166 + $0xb0] sm:$0xff]
        %v220 = vld [vmem:[%s166 + $0xb8] sm:$0xff]
        %v221 = vld [vmem:[%s166 + $0xc0] sm:$0xff]
        %v222 = vld [vmem:[%s166 + $0xc8] sm:$0xff]
        %v223 = vld [vmem:[%s166 + $0xd0] sm:$0xff]
        %v224 = vld [vmem:[%s166 + $0xd8] sm:$0xff]
        %v225 = vld [vmem:[%s166 + $0xe0] sm:$0xff]
        %v226 = vld [vmem:[%s166 + $0xe8] sm:$0xff]
        %v227 = vld [vmem:[%s166 + $0xf0] sm:$0xff]
        %v228 = vld [vmem:[%s166 + $0xf8] sm:$0xff]
        %v229 = vld [vmem:[%s166 + $0x100] sm:$0xff]
        %v230 = vld [vmem:[%s166 + $0x108] sm:$0xff]
        %v231 = vld [vmem:[%s166 + $0x110] sm:$0xff]
        %v232 = vld [vmem:[%s166 + $0x118] sm:$0xff]
        %v233 = vld [vmem:[%s166 + $0x120] sm:$0xff]
        %v234 = vld [vmem:[%s166 + $0x128] sm:$0xff]
        %v235 = vld [vmem:[%s166 + $0x130] sm:$0xff]
        %v236 = vld [vmem:[%s166 + $0x138] sm:$0xff]
        %v237 = vld [vmem:[%s166 + $0x140] sm:$0xff]
        %v238 = vld [vmem:[%s166 + $0x148] sm:$0xff]
        %v239 = vld [vmem:[%s166 + $0x150] sm:$0xff]
        %v240 = vld [vmem:[%s166 + $0x158] sm:$0xff]
        %v241 = vld [vmem:[%s166 + $0x160] sm:$0xff]
        %v242 = vld [vmem:[%s166 + $0x168] sm:$0xff]
        %v243 = vld [vmem:[%s166 + $0x170] sm:$0xff]
        %v244 = vld [vmem:[%s166 + $0x178] sm:$0xff]
        %v245 = vld [vmem:[%s166 + $0x180] sm:$0xff]
        %v246 = vld [vmem:[%s166 + $0x188] sm:$0xff]
        %v247 = vld [vmem:[%s166 + $0x190] sm:$0xff]
        %v248 = vld [vmem:[%s166 + $0x198] sm:$0xff]
        %v249 = vld [vmem:[%s166 + $0x1a0] sm:$0xff]
        %v250 = vld [vmem:[%s166 + $0x1a8] sm:$0xff]
        %v251 = vld [vmem:[%s166 + $0x1b0] sm:$0xff]
        %v252 = vld [vmem:[%s166 + $0x1b8] sm:$0xff]
        %v253 = vld [vmem:[%s166 + $0x1c0] sm:$0xff]
        %v254 = vld [vmem:[%s166 + $0x1c8] sm:$0xff]
        %v255 = vld [vmem:[%s166 + $0x1d0] sm:$0xff]
        %v256 = vld [vmem:[%s166 + $0x1d8] sm:$0xff]
        %v257 = vld [vmem:[%s166 + $0x1e0] sm:$0xff]
        %v258 = vld [vmem:[%s166 + $0x1e8] sm:$0xff]
        %v259 = vld [vmem:[%s166 + $0x1f0] sm:$0x3f]
        %v260 = vld [vmem:[%s166 + $0x1f8] sm:$0x3f]
        %v261 = vstv %s195
        %v262 = vmul.f32 %v197, %v261
        %v263 = vmul.f32 %v198, %v261
        %v264 = vmul.f32 %v199, %v261
        %v265 = vmul.f32 %v200, %v261
        %v266 = vmul.f32 %v201, %v261
        %v267 = vmul.f32 %v202, %v261
        %v268 = vmul.f32 %v203, %v261
        %v269 = vmul.f32 %v204, %v261
        %v270 = vmul.f32 %v205, %v261
        %v271 = vmul.f32 %v206, %v261
        %v272 = vmul.f32 %v207, %v261
        %v273 = vmul.f32 %v208, %v261
        %v274 = vmul.f32 %v209, %v261
        %v275 = vmul.f32 %v210, %v261
        %v276 = vmul.f32 %v211, %v261
        %v277 = vmul.f32 %v212, %v261
        %v278 = vmul.f32 %v213, %v261
        %v279 = vmul.f32 %v214, %v261
        %v280 = vmul.f32 %v215, %v261
        %v281 = vmul.f32 %v216, %v261
        %v282 = vmul.f32 %v217, %v261
        %v283 = vmul.f32 %v218, %v261
        %v284 = vmul.f32 %v219, %v261
        %v285 = vmul.f32 %v220, %v261
        %v286 = vmul.f32 %v221, %v261
        %v287 = vmul.f32 %v222, %v261
        %v288 = vmul.f32 %v223, %v261
        %v289 = vmul.f32 %v224, %v261
        %v290 = vmul.f32 %v225, %v261
        %v291 = vmul.f32 %v226, %v261
        %v292 = vmul.f32 %v227, %v261
        %v293 = vmul.f32 %v228, %v261
        %v294 = vmul.f32 %v229, %v261
        %v295 = vmul.f32 %v230, %v261
        %v296 = vmul.f32 %v231, %v261
        %v297 = vmul.f32 %v232, %v261
        %v298 = vmul.f32 %v233, %v261
        %v299 = vmul.f32 %v234, %v261
        %v300 = vmul.f32 %v235, %v261
        %v301 = vmul.f32 %v236, %v261
        %v302 = vmul.f32 %v237, %v261
        %v303 = vmul.f32 %v238, %v261
        %v304 = vmul.f32 %v239, %v261
        %v305 = vmul.f32 %v240, %v261
        %v306 = vmul.f32 %v241, %v261
        %v307 = vmul.f32 %v242, %v261
        %v308 = vmul.f32 %v243, %v261
        %v309 = vmul.f32 %v244, %v261
        %v310 = vmul.f32 %v245, %v261
        %v311 = vmul.f32 %v246, %v261
        %v312 = vmul.f32 %v247, %v261
        %v313 = vmul.f32 %v248, %v261
        %v314 = vmul.f32 %v249, %v261
        %v315 = vmul.f32 %v250, %v261
        %v316 = vmul.f32 %v251, %v261
        %v317 = vmul.f32 %v252, %v261
        %v318 = vmul.f32 %v253, %v261
        %v319 = vmul.f32 %v254, %v261
        %v320 = vmul.f32 %v255, %v261
        %v321 = vmul.f32 %v256, %v261
        %v322 = vmul.f32 %v257, %v261
        %v323 = vmul.f32 %v258, %v261
        %v324 = vmul.f32 %v259, %v261
        %v325 = vmul.f32 %v260, %v261
        %v326 = vstv %s196
        %v327 = vadd.f32 %v262, %v326
        %v328 = vadd.f32 %v263, %v326
        %v329 = vadd.f32 %v264, %v326
        %v330 = vadd.f32 %v265, %v326
        %v331 = vadd.f32 %v266, %v326
        %v332 = vadd.f32 %v267, %v326
        %v333 = vadd.f32 %v268, %v326
        %v334 = vadd.f32 %v269, %v326
        %v335 = vadd.f32 %v270, %v326
        %v336 = vadd.f32 %v271, %v326
        %v337 = vadd.f32 %v272, %v326
        %v338 = vadd.f32 %v273, %v326
        %v339 = vadd.f32 %v274, %v326
        %v340 = vadd.f32 %v275, %v326
        %v341 = vadd.f32 %v276, %v326
        %v342 = vadd.f32 %v277, %v326
        %v343 = vadd.f32 %v278, %v326
        %v344 = vadd.f32 %v279, %v326
        %v345 = vadd.f32 %v280, %v326
        %v346 = vadd.f32 %v281, %v326
        %v347 = vadd.f32 %v282, %v326
        %v348 = vadd.f32 %v283, %v326
        %v349 = vadd.f32 %v284, %v326
        %v350 = vadd.f32 %v285, %v326
        %v351 = vadd.f32 %v286, %v326
        %v352 = vadd.f32 %v287, %v326
        %v353 = vadd.f32 %v288, %v326
        %v354 = vadd.f32 %v289, %v326
        %v355 = vadd.f32 %v290, %v326
        %v356 = vadd.f32 %v291, %v326
        %v357 = vadd.f32 %v292, %v326
        %v358 = vadd.f32 %v293, %v326
        %v359 = vadd.f32 %v294, %v326
        %v360 = vadd.f32 %v295, %v326
        %v361 = vadd.f32 %v296, %v326
        %v362 = vadd.f32 %v297, %v326
        %v363 = vadd.f32 %v298, %v326
        %v364 = vadd.f32 %v299, %v326
        %v365 = vadd.f32 %v300, %v326
        %v366 = vadd.f32 %v301, %v326
        %v367 = vadd.f32 %v302, %v326
        %v368 = vadd.f32 %v303, %v326
        %v369 = vadd.f32 %v304, %v326
        %v370 = vadd.f32 %v305, %v326
        %v371 = vadd.f32 %v306, %v326
        %v372 = vadd.f32 %v307, %v326
        %v373 = vadd.f32 %v308, %v326
        %v374 = vadd.f32 %v309, %v326
        %v375 = vadd.f32 %v310, %v326
        %v376 = vadd.f32 %v311, %v326
        %v377 = vadd.f32 %v312, %v326
        %v378 = vadd.f32 %v313, %v326
        %v379 = vadd.f32 %v314, %v326
        %v380 = vadd.f32 %v315, %v326
        %v381 = vadd.f32 %v316, %v326
        %v382 = vadd.f32 %v317, %v326
        %v383 = vadd.f32 %v318, %v326
        %v384 = vadd.f32 %v319, %v326
        %v385 = vadd.f32 %v320, %v326
        %v386 = vadd.f32 %v321, %v326
        %v387 = vadd.f32 %v322, %v326
        %v388 = vadd.f32 %v323, %v326
        %v389 = vadd.f32 %v324, %v326
        %v390 = vadd.f32 %v325, %v326
        %v391 = vxor.u32 %v327, 2147483648
        %v392 = vxor.u32 %v328, 2147483648
        %v393 = vxor.u32 %v329, 2147483648
        %v394 = vxor.u32 %v330, 2147483648
        %v395 = vxor.u32 %v331, 2147483648
        %v396 = vxor.u32 %v332, 2147483648
        %v397 = vxor.u32 %v333, 2147483648
        %v398 = vxor.u32 %v334, 2147483648
        %v399 = vxor.u32 %v335, 2147483648
        %v400 = vxor.u32 %v336, 2147483648
        %v401 = vxor.u32 %v337, 2147483648
        %v402 = vxor.u32 %v338, 2147483648
        %v403 = vxor.u32 %v339, 2147483648
        %v404 = vxor.u32 %v340, 2147483648
        %v405 = vxor.u32 %v341, 2147483648
        %v406 = vxor.u32 %v342, 2147483648
        %v407 = vxor.u32 %v343, 2147483648
        %v408 = vxor.u32 %v344, 2147483648
        %v409 = vxor.u32 %v345, 2147483648
        %v410 = vxor.u32 %v346, 2147483648
        %v411 = vxor.u32 %v347, 2147483648
        %v412 = vxor.u32 %v348, 2147483648
        %v413 = vxor.u32 %v349, 2147483648
        %v414 = vxor.u32 %v350, 2147483648
        %v415 = vxor.u32 %v351, 2147483648
        %v416 = vxor.u32 %v352, 2147483648
        %v417 = vxor.u32 %v353, 2147483648
        %v418 = vxor.u32 %v354, 2147483648
        %v419 = vxor.u32 %v355, 2147483648
        %v420 = vxor.u32 %v356, 2147483648
        %v421 = vxor.u32 %v357, 2147483648
        %v422 = vxor.u32 %v358, 2147483648
        %v423 = vxor.u32 %v359, 2147483648
        %v424 = vxor.u32 %v360, 2147483648
        %v425 = vxor.u32 %v361, 2147483648
        %v426 = vxor.u32 %v362, 2147483648
        %v427 = vxor.u32 %v363, 2147483648
        %v428 = vxor.u32 %v364, 2147483648
        %v429 = vxor.u32 %v365, 2147483648
        %v430 = vxor.u32 %v366, 2147483648
        %v431 = vxor.u32 %v367, 2147483648
        %v432 = vxor.u32 %v368, 2147483648
        %v433 = vxor.u32 %v369, 2147483648
        %v434 = vxor.u32 %v370, 2147483648
        %v435 = vxor.u32 %v371, 2147483648
        %v436 = vxor.u32 %v372, 2147483648
        %v437 = vxor.u32 %v373, 2147483648
        %v438 = vxor.u32 %v374, 2147483648
        %v439 = vxor.u32 %v375, 2147483648
        %v440 = vxor.u32 %v376, 2147483648
        %v441 = vxor.u32 %v377, 2147483648
        %v442 = vxor.u32 %v378, 2147483648
        %v443 = vxor.u32 %v379, 2147483648
        %v444 = vxor.u32 %v380, 2147483648
        %v445 = vxor.u32 %v381, 2147483648
        %v446 = vxor.u32 %v382, 2147483648
        %v447 = vxor.u32 %v383, 2147483648
        %v448 = vxor.u32 %v384, 2147483648
        %v449 = vxor.u32 %v385, 2147483648
        %v450 = vxor.u32 %v386, 2147483648
        %v451 = vxor.u32 %v387, 2147483648
        %v452 = vxor.u32 %v388, 2147483648
        %v453 = vxor.u32 %v389, 2147483648
        %v454 = vxor.u32 %v390, 2147483648
        %v455 = vmul.f32 %v391, 1.442695
        %v456 = vpow.pop %v455
        %v457 = vmul.f32 %v392, 1.442695
        %v458 = vpow.pop %v457
        %v459 = vmul.f32 %v393, 1.442695
        %v460 = vpow.pop %v459
        %v461 = vmul.f32 %v394, 1.442695
        %v462 = vpow.pop %v461
        %v463 = vmul.f32 %v395, 1.442695
        %v464 = vpow.pop %v463
        %v465 = vmul.f32 %v396, 1.442695
        %v466 = vpow.pop %v465
        %v467 = vmul.f32 %v397, 1.442695
        %v468 = vpow.pop %v467
        %v469 = vmul.f32 %v398, 1.442695
        %v470 = vpow.pop %v469
        %v471 = vmul.f32 %v399, 1.442695
        %v472 = vpow.pop %v471
        %v473 = vmul.f32 %v400, 1.442695
        %v474 = vpow.pop %v473
        %v475 = vmul.f32 %v401, 1.442695
        %v476 = vpow.pop %v475
        %v477 = vmul.f32 %v402, 1.442695
        %v478 = vpow.pop %v477
        %v479 = vmul.f32 %v403, 1.442695
        %v480 = vpow.pop %v479
        %v481 = vmul.f32 %v404, 1.442695
        %v482 = vpow.pop %v481
        %v483 = vmul.f32 %v405, 1.442695
        %v484 = vpow.pop %v483
        %v485 = vmul.f32 %v406, 1.442695
        %v486 = vpow.pop %v485
        %v487 = vmul.f32 %v407, 1.442695
        %v488 = vpow.pop %v487
        %v489 = vmul.f32 %v408, 1.442695
        %v490 = vpow.pop %v489
        %v491 = vmul.f32 %v409, 1.442695
        %v492 = vpow.pop %v491
        %v493 = vmul.f32 %v410, 1.442695
        %v494 = vpow.pop %v493
        %v495 = vmul.f32 %v411, 1.442695
        %v496 = vpow.pop %v495
        %v497 = vmul.f32 %v412, 1.442695
        %v498 = vpow.pop %v497
        %v499 = vmul.f32 %v413, 1.442695
        %v500 = vpow.pop %v499
        %v501 = vmul.f32 %v414, 1.442695
        %v502 = vpow.pop %v501
        %v503 = vmul.f32 %v415, 1.442695
        %v504 = vpow.pop %v503
        %v505 = vmul.f32 %v416, 1.442695
        %v506 = vpow.pop %v505
        %v507 = vmul.f32 %v417, 1.442695
        %v508 = vpow.pop %v507
        %v509 = vmul.f32 %v418, 1.442695
        %v510 = vpow.pop %v509
        %v511 = vmul.f32 %v419, 1.442695
        %v512 = vpow.pop %v511
        %v513 = vmul.f32 %v420, 1.442695
        %v514 = vpow.pop %v513
        %v515 = vmul.f32 %v421, 1.442695
        %v516 = vpow.pop %v515
        %v517 = vmul.f32 %v422, 1.442695
        %v518 = vpow.pop %v517
        %v519 = vmul.f32 %v423, 1.442695
        %v520 = vpow.pop %v519
        %v521 = vmul.f32 %v424, 1.442695
        %v522 = vpow.pop %v521
        %v523 = vmul.f32 %v425, 1.442695
        %v524 = vpow.pop %v523
        %v525 = vmul.f32 %v426, 1.442695
        %v526 = vpow.pop %v525
        %v527 = vmul.f32 %v427, 1.442695
        %v528 = vpow.pop %v527
        %v529 = vmul.f32 %v428, 1.442695
        %v530 = vpow.pop %v529
        %v531 = vmul.f32 %v429, 1.442695
        %v532 = vpow.pop %v531
        %v533 = vmul.f32 %v430, 1.442695
        %v534 = vpow.pop %v533
        %v535 = vmul.f32 %v431, 1.442695
        %v536 = vpow.pop %v535
        %v537 = vmul.f32 %v432, 1.442695
        %v538 = vpow.pop %v537
        %v539 = vmul.f32 %v433, 1.442695
        %v540 = vpow.pop %v539
        %v541 = vmul.f32 %v434, 1.442695
        %v542 = vpow.pop %v541
        %v543 = vmul.f32 %v435, 1.442695
        %v544 = vpow.pop %v543
        %v545 = vmul.f32 %v436, 1.442695
        %v546 = vpow.pop %v545
        %v547 = vmul.f32 %v437, 1.442695
        %v548 = vpow.pop %v547
        %v549 = vmul.f32 %v438, 1.442695
        %v550 = vpow.pop %v549
        %v551 = vmul.f32 %v439, 1.442695
        %v552 = vpow.pop %v551
        %v553 = vmul.f32 %v440, 1.442695
        %v554 = vpow.pop %v553
        %v555 = vmul.f32 %v441, 1.442695
        %v556 = vpow.pop %v555
        %v557 = vmul.f32 %v442, 1.442695
        %v558 = vpow.pop %v557
        %v559 = vmul.f32 %v443, 1.442695
        %v560 = vpow.pop %v559
        %v561 = vmul.f32 %v444, 1.442695
        %v562 = vpow.pop %v561
        %v563 = vmul.f32 %v445, 1.442695
        %v564 = vpow.pop %v563
        %v565 = vmul.f32 %v446, 1.442695
        %v566 = vpow.pop %v565
        %v567 = vmul.f32 %v447, 1.442695
        %v568 = vpow.pop %v567
        %v569 = vmul.f32 %v448, 1.442695
        %v570 = vpow.pop %v569
        %v571 = vmul.f32 %v449, 1.442695
        %v572 = vpow.pop %v571
        %v573 = vmul.f32 %v450, 1.442695
        %v574 = vpow.pop %v573
        %v575 = vmul.f32 %v451, 1.442695
        %v576 = vpow.pop %v575
        %v577 = vmul.f32 %v452, 1.442695
        %v578 = vpow.pop %v577
        %v579 = vmul.f32 %v453, 1.442695
        %v580 = vpow.pop %v579
        %v581 = vmul.f32 %v454, 1.442695
        %v582 = vpow.pop %v581
        %v583 = vadd.f32 %v456, 1.0
        %v584 = vadd.f32 %v458, 1.0
        %v585 = vadd.f32 %v460, 1.0
        %v586 = vadd.f32 %v462, 1.0
        %v587 = vadd.f32 %v464, 1.0
        %v588 = vadd.f32 %v466, 1.0
        %v589 = vadd.f32 %v468, 1.0
        %v590 = vadd.f32 %v470, 1.0
        %v591 = vadd.f32 %v472, 1.0
        %v592 = vadd.f32 %v474, 1.0
        %v593 = vadd.f32 %v476, 1.0
        %v594 = vadd.f32 %v478, 1.0
        %v595 = vadd.f32 %v480, 1.0
        %v596 = vadd.f32 %v482, 1.0
        %v597 = vadd.f32 %v484, 1.0
        %v598 = vadd.f32 %v486, 1.0
        %v599 = vadd.f32 %v488, 1.0
        %v600 = vadd.f32 %v490, 1.0
        %v601 = vadd.f32 %v492, 1.0
        %v602 = vadd.f32 %v494, 1.0
        %v603 = vadd.f32 %v496, 1.0
        %v604 = vadd.f32 %v498, 1.0
        %v605 = vadd.f32 %v500, 1.0
        %v606 = vadd.f32 %v502, 1.0
        %v607 = vadd.f32 %v504, 1.0
        %v608 = vadd.f32 %v506, 1.0
        %v609 = vadd.f32 %v508, 1.0
        %v610 = vadd.f32 %v510, 1.0
        %v611 = vadd.f32 %v512, 1.0
        %v612 = vadd.f32 %v514, 1.0
        %v613 = vadd.f32 %v516, 1.0
        %v614 = vadd.f32 %v518, 1.0
        %v615 = vadd.f32 %v520, 1.0
        %v616 = vadd.f32 %v522, 1.0
        %v617 = vadd.f32 %v524, 1.0
        %v618 = vadd.f32 %v526, 1.0
        %v619 = vadd.f32 %v528, 1.0
        %v620 = vadd.f32 %v530, 1.0
        %v621 = vadd.f32 %v532, 1.0
        %v622 = vadd.f32 %v534, 1.0
        %v623 = vadd.f32 %v536, 1.0
        %v624 = vadd.f32 %v538, 1.0
        %v625 = vadd.f32 %v540, 1.0
        %v626 = vadd.f32 %v542, 1.0
        %v627 = vadd.f32 %v544, 1.0
        %v628 = vadd.f32 %v546, 1.0
        %v629 = vadd.f32 %v548, 1.0
        %v630 = vadd.f32 %v550, 1.0
        %v631 = vadd.f32 %v552, 1.0
        %v632 = vadd.f32 %v554, 1.0
        %v633 = vadd.f32 %v556, 1.0
        %v634 = vadd.f32 %v558, 1.0
        %v635 = vadd.f32 %v560, 1.0
        %v636 = vadd.f32 %v562, 1.0
        %v637 = vadd.f32 %v564, 1.0
        %v638 = vadd.f32 %v566, 1.0
        %v639 = vadd.f32 %v568, 1.0
        %v640 = vadd.f32 %v570, 1.0
        %v641 = vadd.f32 %v572, 1.0
        %v642 = vadd.f32 %v574, 1.0
        %v643 = vadd.f32 %v576, 1.0
        %v644 = vadd.f32 %v578, 1.0
        %v645 = vadd.f32 %v580, 1.0
        %v646 = vadd.f32 %v582, 1.0
        %v647 = vrcp.pop %v583
        %v648 = vmul.f32 %v583, %v647
        %v649 = vsub.f32 1.0, %v648
        %v650 = vmul.f32 %v647, %v649
        %v651 = vadd.f32 %v647, %v650
        %vm652 = vweird.f32 %v583
        %vm653 = vweird.f32 %v647
        %vm654 = vmor %vm652, %vm653
        %v655 = vsel %vm654, %v647, %v651
        %v656 = vand.u32 2147483647, %v583
        %vm657 = vcmp.eq.f32.partialorder %v656, 8.507059e+37
        %v658 = vand.u32 %v583, 2147483648
        %v659 = vor.u32 1.1754944e-38, %v658
        %v660 = vsel %vm657, %v659, %v655
        %v661 = vmul.f32 1.0, %v660
        %v662 = vrcp.pop %v584
        %v663 = vmul.f32 %v584, %v662
        %v664 = vsub.f32 1.0, %v663
        %v665 = vmul.f32 %v662, %v664
        %v666 = vadd.f32 %v662, %v665
        %vm667 = vweird.f32 %v584
        %vm668 = vweird.f32 %v662
        %vm669 = vmor %vm667, %vm668
        %v670 = vsel %vm669, %v662, %v666
        %v671 = vand.u32 2147483647, %v584
        %vm672 = vcmp.eq.f32.partialorder %v671, 8.507059e+37
        %v673 = vand.u32 %v584, 2147483648
        %v674 = vor.u32 1.1754944e-38, %v673
        %v675 = vsel %vm672, %v674, %v670
        %v676 = vmul.f32 1.0, %v675
        %v677 = vrcp.pop %v585
        %v678 = vmul.f32 %v585, %v677
        %v679 = vsub.f32 1.0, %v678
        %v680 = vmul.f32 %v677, %v679
        %v681 = vadd.f32 %v677, %v680
        %vm682 = vweird.f32 %v585
        %vm683 = vweird.f32 %v677
        %vm684 = vmor %vm682, %vm683
        %v685 = vsel %vm684, %v677, %v681
        %v686 = vand.u32 2147483647, %v585
        %vm687 = vcmp.eq.f32.partialorder %v686, 8.507059e+37
        %v688 = vand.u32 %v585, 2147483648
        %v689 = vor.u32 1.1754944e-38, %v688
        %v690 = vsel %vm687, %v689, %v685
        %v691 = vmul.f32 1.0, %v690
        %v692 = vrcp.pop %v586
        %v693 = vmul.f32 %v586, %v692
        %v694 = vsub.f32 1.0, %v693
        %v695 = vmul.f32 %v692, %v694
        %v696 = vadd.f32 %v692, %v695
        %vm697 = vweird.f32 %v586
        %vm698 = vweird.f32 %v692
        %vm699 = vmor %vm697, %vm698
        %v700 = vsel %vm699, %v692, %v696
        %v701 = vand.u32 2147483647, %v586
        %vm702 = vcmp.eq.f32.partialorder %v701, 8.507059e+37
        %v703 = vand.u32 %v586, 2147483648
        %v704 = vor.u32 1.1754944e-38, %v703
        %v705 = vsel %vm702, %v704, %v700
        %v706 = vmul.f32 1.0, %v705
        %v707 = vrcp.pop %v587
        %v708 = vmul.f32 %v587, %v707
        %v709 = vsub.f32 1.0, %v708
        %v710 = vmul.f32 %v707, %v709
        %v711 = vadd.f32 %v707, %v710
        %vm712 = vweird.f32 %v587
        %vm713 = vweird.f32 %v707
        %vm714 = vmor %vm712, %vm713
        %v715 = vsel %vm714, %v707, %v711
        %v716 = vand.u32 2147483647, %v587
        %vm717 = vcmp.eq.f32.partialorder %v716, 8.507059e+37
        %v718 = vand.u32 %v587, 2147483648
        %v719 = vor.u32 1.1754944e-38, %v718
        %v720 = vsel %vm717, %v719, %v715
        %v721 = vmul.f32 1.0, %v720
        %v722 = vrcp.pop %v588
        %v723 = vmul.f32 %v588, %v722
        %v724 = vsub.f32 1.0, %v723
        %v725 = vmul.f32 %v722, %v724
        %v726 = vadd.f32 %v722, %v725
        %vm727 = vweird.f32 %v588
        %vm728 = vweird.f32 %v722
        %vm729 = vmor %vm727, %vm728
        %v730 = vsel %vm729, %v722, %v726
        %v731 = vand.u32 2147483647, %v588
        %vm732 = vcmp.eq.f32.partialorder %v731, 8.507059e+37
        %v733 = vand.u32 %v588, 2147483648
        %v734 = vor.u32 1.1754944e-38, %v733
        %v735 = vsel %vm732, %v734, %v730
        %v736 = vmul.f32 1.0, %v735
        %v737 = vrcp.pop %v589
        %v738 = vmul.f32 %v589, %v737
        %v739 = vsub.f32 1.0, %v738
        %v740 = vmul.f32 %v737, %v739
        %v741 = vadd.f32 %v737, %v740
        %vm742 = vweird.f32 %v589
        %vm743 = vweird.f32 %v737
        %vm744 = vmor %vm742, %vm743
        %v745 = vsel %vm744, %v737, %v741
        %v746 = vand.u32 2147483647, %v589
        %vm747 = vcmp.eq.f32.partialorder %v746, 8.507059e+37
        %v748 = vand.u32 %v589, 2147483648
        %v749 = vor.u32 1.1754944e-38, %v748
        %v750 = vsel %vm747, %v749, %v745
        %v751 = vmul.f32 1.0, %v750
        %v752 = vrcp.pop %v590
        %v753 = vmul.f32 %v590, %v752
        %v754 = vsub.f32 1.0, %v753
        %v755 = vmul.f32 %v752, %v754
        %v756 = vadd.f32 %v752, %v755
        %vm757 = vweird.f32 %v590
        %vm758 = vweird.f32 %v752
        %vm759 = vmor %vm757, %vm758
        %v760 = vsel %vm759, %v752, %v756
        %v761 = vand.u32 2147483647, %v590
        %vm762 = vcmp.eq.f32.partialorder %v761, 8.507059e+37
        %v763 = vand.u32 %v590, 2147483648
        %v764 = vor.u32 1.1754944e-38, %v763
        %v765 = vsel %vm762, %v764, %v760
        %v766 = vmul.f32 1.0, %v765
        %v767 = vrcp.pop %v591
        %v768 = vmul.f32 %v591, %v767
        %v769 = vsub.f32 1.0, %v768
        %v770 = vmul.f32 %v767, %v769
        %v771 = vadd.f32 %v767, %v770
        %vm772 = vweird.f32 %v591
        %vm773 = vweird.f32 %v767
        %vm774 = vmor %vm772, %vm773
        %v775 = vsel %vm774, %v767, %v771
        %v776 = vand.u32 2147483647, %v591
        %vm777 = vcmp.eq.f32.partialorder %v776, 8.507059e+37
        %v778 = vand.u32 %v591, 2147483648
        %v779 = vor.u32 1.1754944e-38, %v778
        %v780 = vsel %vm777, %v779, %v775
        %v781 = vmul.f32 1.0, %v780
        %v782 = vrcp.pop %v592
        %v783 = vmul.f32 %v592, %v782
        %v784 = vsub.f32 1.0, %v783
        %v785 = vmul.f32 %v782, %v784
        %v786 = vadd.f32 %v782, %v785
        %vm787 = vweird.f32 %v592
        %vm788 = vweird.f32 %v782
        %vm789 = vmor %vm787, %vm788
        %v790 = vsel %vm789, %v782, %v786
        %v791 = vand.u32 2147483647, %v592
        %vm792 = vcmp.eq.f32.partialorder %v791, 8.507059e+37
        %v793 = vand.u32 %v592, 2147483648
        %v794 = vor.u32 1.1754944e-38, %v793
        %v795 = vsel %vm792, %v794, %v790
        %v796 = vmul.f32 1.0, %v795
        %v797 = vrcp.pop %v593
        %v798 = vmul.f32 %v593, %v797
        %v799 = vsub.f32 1.0, %v798
        %v800 = vmul.f32 %v797, %v799
        %v801 = vadd.f32 %v797, %v800
        %vm802 = vweird.f32 %v593
        %vm803 = vweird.f32 %v797
        %vm804 = vmor %vm802, %vm803
        %v805 = vsel %vm804, %v797, %v801
        %v806 = vand.u32 2147483647, %v593
        %vm807 = vcmp.eq.f32.partialorder %v806, 8.507059e+37
        %v808 = vand.u32 %v593, 2147483648
        %v809 = vor.u32 1.1754944e-38, %v808
        %v810 = vsel %vm807, %v809, %v805
        %v811 = vmul.f32 1.0, %v810
        %v812 = vrcp.pop %v594
        %v813 = vmul.f32 %v594, %v812
        %v814 = vsub.f32 1.0, %v813
        %v815 = vmul.f32 %v812, %v814
        %v816 = vadd.f32 %v812, %v815
        %vm817 = vweird.f32 %v594
        %vm818 = vweird.f32 %v812
        %vm819 = vmor %vm817, %vm818
        %v820 = vsel %vm819, %v812, %v816
        %v821 = vand.u32 2147483647, %v594
        %vm822 = vcmp.eq.f32.partialorder %v821, 8.507059e+37
        %v823 = vand.u32 %v594, 2147483648
        %v824 = vor.u32 1.1754944e-38, %v823
        %v825 = vsel %vm822, %v824, %v820
        %v826 = vmul.f32 1.0, %v825
        %v827 = vrcp.pop %v595
        %v828 = vmul.f32 %v595, %v827
        %v829 = vsub.f32 1.0, %v828
        %v830 = vmul.f32 %v827, %v829
        %v831 = vadd.f32 %v827, %v830
        %vm832 = vweird.f32 %v595
        %vm833 = vweird.f32 %v827
        %vm834 = vmor %vm832, %vm833
        %v835 = vsel %vm834, %v827, %v831
        %v836 = vand.u32 2147483647, %v595
        %vm837 = vcmp.eq.f32.partialorder %v836, 8.507059e+37
        %v838 = vand.u32 %v595, 2147483648
        %v839 = vor.u32 1.1754944e-38, %v838
        %v840 = vsel %vm837, %v839, %v835
        %v841 = vmul.f32 1.0, %v840
        %v842 = vrcp.pop %v596
        %v843 = vmul.f32 %v596, %v842
        %v844 = vsub.f32 1.0, %v843
        %v845 = vmul.f32 %v842, %v844
        %v846 = vadd.f32 %v842, %v845
        %vm847 = vweird.f32 %v596
        %vm848 = vweird.f32 %v842
        %vm849 = vmor %vm847, %vm848
        %v850 = vsel %vm849, %v842, %v846
        %v851 = vand.u32 2147483647, %v596
        %vm852 = vcmp.eq.f32.partialorder %v851, 8.507059e+37
        %v853 = vand.u32 %v596, 2147483648
        %v854 = vor.u32 1.1754944e-38, %v853
        %v855 = vsel %vm852, %v854, %v850
        %v856 = vmul.f32 1.0, %v855
        %v857 = vrcp.pop %v597
        %v858 = vmul.f32 %v597, %v857
        %v859 = vsub.f32 1.0, %v858
        %v860 = vmul.f32 %v857, %v859
        %v861 = vadd.f32 %v857, %v860
        %vm862 = vweird.f32 %v597
        %vm863 = vweird.f32 %v857
        %vm864 = vmor %vm862, %vm863
        %v865 = vsel %vm864, %v857, %v861
        %v866 = vand.u32 2147483647, %v597
        %vm867 = vcmp.eq.f32.partialorder %v866, 8.507059e+37
        %v868 = vand.u32 %v597, 2147483648
        %v869 = vor.u32 1.1754944e-38, %v868
        %v870 = vsel %vm867, %v869, %v865
        %v871 = vmul.f32 1.0, %v870
        %v872 = vrcp.pop %v598
        %v873 = vmul.f32 %v598, %v872
        %v874 = vsub.f32 1.0, %v873
        %v875 = vmul.f32 %v872, %v874
        %v876 = vadd.f32 %v872, %v875
        %vm877 = vweird.f32 %v598
        %vm878 = vweird.f32 %v872
        %vm879 = vmor %vm877, %vm878
        %v880 = vsel %vm879, %v872, %v876
        %v881 = vand.u32 2147483647, %v598
        %vm882 = vcmp.eq.f32.partialorder %v881, 8.507059e+37
        %v883 = vand.u32 %v598, 2147483648
        %v884 = vor.u32 1.1754944e-38, %v883
        %v885 = vsel %vm882, %v884, %v880
        %v886 = vmul.f32 1.0, %v885
        %v887 = vrcp.pop %v599
        %v888 = vmul.f32 %v599, %v887
        %v889 = vsub.f32 1.0, %v888
        %v890 = vmul.f32 %v887, %v889
        %v891 = vadd.f32 %v887, %v890
        %vm892 = vweird.f32 %v599
        %vm893 = vweird.f32 %v887
        %vm894 = vmor %vm892, %vm893
        %v895 = vsel %vm894, %v887, %v891
        %v896 = vand.u32 2147483647, %v599
        %vm897 = vcmp.eq.f32.partialorder %v896, 8.507059e+37
        %v898 = vand.u32 %v599, 2147483648
        %v899 = vor.u32 1.1754944e-38, %v898
        %v900 = vsel %vm897, %v899, %v895
        %v901 = vmul.f32 1.0, %v900
        %v902 = vrcp.pop %v600
        %v903 = vmul.f32 %v600, %v902
        %v904 = vsub.f32 1.0, %v903
        %v905 = vmul.f32 %v902, %v904
        %v906 = vadd.f32 %v902, %v905
        %vm907 = vweird.f32 %v600
        %vm908 = vweird.f32 %v902
        %vm909 = vmor %vm907, %vm908
        %v910 = vsel %vm909, %v902, %v906
        %v911 = vand.u32 2147483647, %v600
        %vm912 = vcmp.eq.f32.partialorder %v911, 8.507059e+37
        %v913 = vand.u32 %v600, 2147483648
        %v914 = vor.u32 1.1754944e-38, %v913
        %v915 = vsel %vm912, %v914, %v910
        %v916 = vmul.f32 1.0, %v915
        %v917 = vrcp.pop %v601
        %v918 = vmul.f32 %v601, %v917
        %v919 = vsub.f32 1.0, %v918
        %v920 = vmul.f32 %v917, %v919
        %v921 = vadd.f32 %v917, %v920
        %vm922 = vweird.f32 %v601
        %vm923 = vweird.f32 %v917
        %vm924 = vmor %vm922, %vm923
        %v925 = vsel %vm924, %v917, %v921
        %v926 = vand.u32 2147483647, %v601
        %vm927 = vcmp.eq.f32.partialorder %v926, 8.507059e+37
        %v928 = vand.u32 %v601, 2147483648
        %v929 = vor.u32 1.1754944e-38, %v928
        %v930 = vsel %vm927, %v929, %v925
        %v931 = vmul.f32 1.0, %v930
        %v932 = vrcp.pop %v602
        %v933 = vmul.f32 %v602, %v932
        %v934 = vsub.f32 1.0, %v933
        %v935 = vmul.f32 %v932, %v934
        %v936 = vadd.f32 %v932, %v935
        %vm937 = vweird.f32 %v602
        %vm938 = vweird.f32 %v932
        %vm939 = vmor %vm937, %vm938
        %v940 = vsel %vm939, %v932, %v936
        %v941 = vand.u32 2147483647, %v602
        %vm942 = vcmp.eq.f32.partialorder %v941, 8.507059e+37
        %v943 = vand.u32 %v602, 2147483648
        %v944 = vor.u32 1.1754944e-38, %v943
        %v945 = vsel %vm942, %v944, %v940
        %v946 = vmul.f32 1.0, %v945
        %v947 = vrcp.pop %v603
        %v948 = vmul.f32 %v603, %v947
        %v949 = vsub.f32 1.0, %v948
        %v950 = vmul.f32 %v947, %v949
        %v951 = vadd.f32 %v947, %v950
        %vm952 = vweird.f32 %v603
        %vm953 = vweird.f32 %v947
        %vm954 = vmor %vm952, %vm953
        %v955 = vsel %vm954, %v947, %v951
        %v956 = vand.u32 2147483647, %v603
        %vm957 = vcmp.eq.f32.partialorder %v956, 8.507059e+37
        %v958 = vand.u32 %v603, 2147483648
        %v959 = vor.u32 1.1754944e-38, %v958
        %v960 = vsel %vm957, %v959, %v955
        %v961 = vmul.f32 1.0, %v960
        %v962 = vrcp.pop %v604
        %v963 = vmul.f32 %v604, %v962
        %v964 = vsub.f32 1.0, %v963
        %v965 = vmul.f32 %v962, %v964
        %v966 = vadd.f32 %v962, %v965
        %vm967 = vweird.f32 %v604
        %vm968 = vweird.f32 %v962
        %vm969 = vmor %vm967, %vm968
        %v970 = vsel %vm969, %v962, %v966
        %v971 = vand.u32 2147483647, %v604
        %vm972 = vcmp.eq.f32.partialorder %v971, 8.507059e+37
        %v973 = vand.u32 %v604, 2147483648
        %v974 = vor.u32 1.1754944e-38, %v973
        %v975 = vsel %vm972, %v974, %v970
        %v976 = vmul.f32 1.0, %v975
        %v977 = vrcp.pop %v605
        %v978 = vmul.f32 %v605, %v977
        %v979 = vsub.f32 1.0, %v978
        %v980 = vmul.f32 %v977, %v979
        %v981 = vadd.f32 %v977, %v980
        %vm982 = vweird.f32 %v605
        %vm983 = vweird.f32 %v977
        %vm984 = vmor %vm982, %vm983
        %v985 = vsel %vm984, %v977, %v981
        %v986 = vand.u32 2147483647, %v605
        %vm987 = vcmp.eq.f32.partialorder %v986, 8.507059e+37
        %v988 = vand.u32 %v605, 2147483648
        %v989 = vor.u32 1.1754944e-38, %v988
        %v990 = vsel %vm987, %v989, %v985
        %v991 = vmul.f32 1.0, %v990
        %v992 = vrcp.pop %v606
        %v993 = vmul.f32 %v606, %v992
        %v994 = vsub.f32 1.0, %v993
        %v995 = vmul.f32 %v992, %v994
        %v996 = vadd.f32 %v992, %v995
        %vm997 = vweird.f32 %v606
        %vm998 = vweird.f32 %v992
        %vm999 = vmor %vm997, %vm998
        %v1000 = vsel %vm999, %v992, %v996
        %v1001 = vand.u32 2147483647, %v606
        %vm1002 = vcmp.eq.f32.partialorder %v1001, 8.507059e+37
        %v1003 = vand.u32 %v606, 2147483648
        %v1004 = vor.u32 1.1754944e-38, %v1003
        %v1005 = vsel %vm1002, %v1004, %v1000
        %v1006 = vmul.f32 1.0, %v1005
        %v1007 = vrcp.pop %v607
        %v1008 = vmul.f32 %v607, %v1007
        %v1009 = vsub.f32 1.0, %v1008
        %v1010 = vmul.f32 %v1007, %v1009
        %v1011 = vadd.f32 %v1007, %v1010
        %vm1012 = vweird.f32 %v607
        %vm1013 = vweird.f32 %v1007
        %vm1014 = vmor %vm1012, %vm1013
        %v1015 = vsel %vm1014, %v1007, %v1011
        %v1016 = vand.u32 2147483647, %v607
        %vm1017 = vcmp.eq.f32.partialorder %v1016, 8.507059e+37
        %v1018 = vand.u32 %v607, 2147483648
        %v1019 = vor.u32 1.1754944e-38, %v1018
        %v1020 = vsel %vm1017, %v1019, %v1015
        %v1021 = vmul.f32 1.0, %v1020
        %v1022 = vrcp.pop %v608
        %v1023 = vmul.f32 %v608, %v1022
        %v1024 = vsub.f32 1.0, %v1023
        %v1025 = vmul.f32 %v1022, %v1024
        %v1026 = vadd.f32 %v1022, %v1025
        %vm1027 = vweird.f32 %v608
        %vm1028 = vweird.f32 %v1022
        %vm1029 = vmor %vm1027, %vm1028
        %v1030 = vsel %vm1029, %v1022, %v1026
        %v1031 = vand.u32 2147483647, %v608
        %vm1032 = vcmp.eq.f32.partialorder %v1031, 8.507059e+37
        %v1033 = vand.u32 %v608, 2147483648
        %v1034 = vor.u32 1.1754944e-38, %v1033
        %v1035 = vsel %vm1032, %v1034, %v1030
        %v1036 = vmul.f32 1.0, %v1035
        %v1037 = vrcp.pop %v609
        %v1038 = vmul.f32 %v609, %v1037
        %v1039 = vsub.f32 1.0, %v1038
        %v1040 = vmul.f32 %v1037, %v1039
        %v1041 = vadd.f32 %v1037, %v1040
        %vm1042 = vweird.f32 %v609
        %vm1043 = vweird.f32 %v1037
        %vm1044 = vmor %vm1042, %vm1043
        %v1045 = vsel %vm1044, %v1037, %v1041
        %v1046 = vand.u32 2147483647, %v609
        %vm1047 = vcmp.eq.f32.partialorder %v1046, 8.507059e+37
        %v1048 = vand.u32 %v609, 2147483648
        %v1049 = vor.u32 1.1754944e-38, %v1048
        %v1050 = vsel %vm1047, %v1049, %v1045
        %v1051 = vmul.f32 1.0, %v1050
        %v1052 = vrcp.pop %v610
        %v1053 = vmul.f32 %v610, %v1052
        %v1054 = vsub.f32 1.0, %v1053
        %v1055 = vmul.f32 %v1052, %v1054
        %v1056 = vadd.f32 %v1052, %v1055
        %vm1057 = vweird.f32 %v610
        %vm1058 = vweird.f32 %v1052
        %vm1059 = vmor %vm1057, %vm1058
        %v1060 = vsel %vm1059, %v1052, %v1056
        %v1061 = vand.u32 2147483647, %v610
        %vm1062 = vcmp.eq.f32.partialorder %v1061, 8.507059e+37
        %v1063 = vand.u32 %v610, 2147483648
        %v1064 = vor.u32 1.1754944e-38, %v1063
        %v1065 = vsel %vm1062, %v1064, %v1060
        %v1066 = vmul.f32 1.0, %v1065
        %v1067 = vrcp.pop %v611
        %v1068 = vmul.f32 %v611, %v1067
        %v1069 = vsub.f32 1.0, %v1068
        %v1070 = vmul.f32 %v1067, %v1069
        %v1071 = vadd.f32 %v1067, %v1070
        %vm1072 = vweird.f32 %v611
        %vm1073 = vweird.f32 %v1067
        %vm1074 = vmor %vm1072, %vm1073
        %v1075 = vsel %vm1074, %v1067, %v1071
        %v1076 = vand.u32 2147483647, %v611
        %vm1077 = vcmp.eq.f32.partialorder %v1076, 8.507059e+37
        %v1078 = vand.u32 %v611, 2147483648
        %v1079 = vor.u32 1.1754944e-38, %v1078
        %v1080 = vsel %vm1077, %v1079, %v1075
        %v1081 = vmul.f32 1.0, %v1080
        %v1082 = vrcp.pop %v612
        %v1083 = vmul.f32 %v612, %v1082
        %v1084 = vsub.f32 1.0, %v1083
        %v1085 = vmul.f32 %v1082, %v1084
        %v1086 = vadd.f32 %v1082, %v1085
        %vm1087 = vweird.f32 %v612
        %vm1088 = vweird.f32 %v1082
        %vm1089 = vmor %vm1087, %vm1088
        %v1090 = vsel %vm1089, %v1082, %v1086
        %v1091 = vand.u32 2147483647, %v612
        %vm1092 = vcmp.eq.f32.partialorder %v1091, 8.507059e+37
        %v1093 = vand.u32 %v612, 2147483648
        %v1094 = vor.u32 1.1754944e-38, %v1093
        %v1095 = vsel %vm1092, %v1094, %v1090
        %v1096 = vmul.f32 1.0, %v1095
        %v1097 = vrcp.pop %v613
        %v1098 = vmul.f32 %v613, %v1097
        %v1099 = vsub.f32 1.0, %v1098
        %v1100 = vmul.f32 %v1097, %v1099
        %v1101 = vadd.f32 %v1097, %v1100
        %vm1102 = vweird.f32 %v613
        %vm1103 = vweird.f32 %v1097
        %vm1104 = vmor %vm1102, %vm1103
        %v1105 = vsel %vm1104, %v1097, %v1101
        %v1106 = vand.u32 2147483647, %v613
        %vm1107 = vcmp.eq.f32.partialorder %v1106, 8.507059e+37
        %v1108 = vand.u32 %v613, 2147483648
        %v1109 = vor.u32 1.1754944e-38, %v1108
        %v1110 = vsel %vm1107, %v1109, %v1105
        %v1111 = vmul.f32 1.0, %v1110
        %v1112 = vrcp.pop %v614
        %v1113 = vmul.f32 %v614, %v1112
        %v1114 = vsub.f32 1.0, %v1113
        %v1115 = vmul.f32 %v1112, %v1114
        %v1116 = vadd.f32 %v1112, %v1115
        %vm1117 = vweird.f32 %v614
        %vm1118 = vweird.f32 %v1112
        %vm1119 = vmor %vm1117, %vm1118
        %v1120 = vsel %vm1119, %v1112, %v1116
        %v1121 = vand.u32 2147483647, %v614
        %vm1122 = vcmp.eq.f32.partialorder %v1121, 8.507059e+37
        %v1123 = vand.u32 %v614, 2147483648
        %v1124 = vor.u32 1.1754944e-38, %v1123
        %v1125 = vsel %vm1122, %v1124, %v1120
        %v1126 = vmul.f32 1.0, %v1125
        %v1127 = vrcp.pop %v615
        %v1128 = vmul.f32 %v615, %v1127
        %v1129 = vsub.f32 1.0, %v1128
        %v1130 = vmul.f32 %v1127, %v1129
        %v1131 = vadd.f32 %v1127, %v1130
        %vm1132 = vweird.f32 %v615
        %vm1133 = vweird.f32 %v1127
        %vm1134 = vmor %vm1132, %vm1133
        %v1135 = vsel %vm1134, %v1127, %v1131
        %v1136 = vand.u32 2147483647, %v615
        %vm1137 = vcmp.eq.f32.partialorder %v1136, 8.507059e+37
        %v1138 = vand.u32 %v615, 2147483648
        %v1139 = vor.u32 1.1754944e-38, %v1138
        %v1140 = vsel %vm1137, %v1139, %v1135
        %v1141 = vmul.f32 1.0, %v1140
        %v1142 = vrcp.pop %v616
        %v1143 = vmul.f32 %v616, %v1142
        %v1144 = vsub.f32 1.0, %v1143
        %v1145 = vmul.f32 %v1142, %v1144
        %v1146 = vadd.f32 %v1142, %v1145
        %vm1147 = vweird.f32 %v616
        %vm1148 = vweird.f32 %v1142
        %vm1149 = vmor %vm1147, %vm1148
        %v1150 = vsel %vm1149, %v1142, %v1146
        %v1151 = vand.u32 2147483647, %v616
        %vm1152 = vcmp.eq.f32.partialorder %v1151, 8.507059e+37
        %v1153 = vand.u32 %v616, 2147483648
        %v1154 = vor.u32 1.1754944e-38, %v1153
        %v1155 = vsel %vm1152, %v1154, %v1150
        %v1156 = vmul.f32 1.0, %v1155
        %v1157 = vrcp.pop %v617
        %v1158 = vmul.f32 %v617, %v1157
        %v1159 = vsub.f32 1.0, %v1158
        %v1160 = vmul.f32 %v1157, %v1159
        %v1161 = vadd.f32 %v1157, %v1160
        %vm1162 = vweird.f32 %v617
        %vm1163 = vweird.f32 %v1157
        %vm1164 = vmor %vm1162, %vm1163
        %v1165 = vsel %vm1164, %v1157, %v1161
        %v1166 = vand.u32 2147483647, %v617
        %vm1167 = vcmp.eq.f32.partialorder %v1166, 8.507059e+37
        %v1168 = vand.u32 %v617, 2147483648
        %v1169 = vor.u32 1.1754944e-38, %v1168
        %v1170 = vsel %vm1167, %v1169, %v1165
        %v1171 = vmul.f32 1.0, %v1170
        %v1172 = vrcp.pop %v618
        %v1173 = vmul.f32 %v618, %v1172
        %v1174 = vsub.f32 1.0, %v1173
        %v1175 = vmul.f32 %v1172, %v1174
        %v1176 = vadd.f32 %v1172, %v1175
        %vm1177 = vweird.f32 %v618
        %vm1178 = vweird.f32 %v1172
        %vm1179 = vmor %vm1177, %vm1178
        %v1180 = vsel %vm1179, %v1172, %v1176
        %v1181 = vand.u32 2147483647, %v618
        %vm1182 = vcmp.eq.f32.partialorder %v1181, 8.507059e+37
        %v1183 = vand.u32 %v618, 2147483648
        %v1184 = vor.u32 1.1754944e-38, %v1183
        %v1185 = vsel %vm1182, %v1184, %v1180
        %v1186 = vmul.f32 1.0, %v1185
        %v1187 = vrcp.pop %v619
        %v1188 = vmul.f32 %v619, %v1187
        %v1189 = vsub.f32 1.0, %v1188
        %v1190 = vmul.f32 %v1187, %v1189
        %v1191 = vadd.f32 %v1187, %v1190
        %vm1192 = vweird.f32 %v619
        %vm1193 = vweird.f32 %v1187
        %vm1194 = vmor %vm1192, %vm1193
        %v1195 = vsel %vm1194, %v1187, %v1191
        %v1196 = vand.u32 2147483647, %v619
        %vm1197 = vcmp.eq.f32.partialorder %v1196, 8.507059e+37
        %v1198 = vand.u32 %v619, 2147483648
        %v1199 = vor.u32 1.1754944e-38, %v1198
        %v1200 = vsel %vm1197, %v1199, %v1195
        %v1201 = vmul.f32 1.0, %v1200
        %v1202 = vrcp.pop %v620
        %v1203 = vmul.f32 %v620, %v1202
        %v1204 = vsub.f32 1.0, %v1203
        %v1205 = vmul.f32 %v1202, %v1204
        %v1206 = vadd.f32 %v1202, %v1205
        %vm1207 = vweird.f32 %v620
        %vm1208 = vweird.f32 %v1202
        %vm1209 = vmor %vm1207, %vm1208
        %v1210 = vsel %vm1209, %v1202, %v1206
        %v1211 = vand.u32 2147483647, %v620
        %vm1212 = vcmp.eq.f32.partialorder %v1211, 8.507059e+37
        %v1213 = vand.u32 %v620, 2147483648
        %v1214 = vor.u32 1.1754944e-38, %v1213
        %v1215 = vsel %vm1212, %v1214, %v1210
        %v1216 = vmul.f32 1.0, %v1215
        %v1217 = vrcp.pop %v621
        %v1218 = vmul.f32 %v621, %v1217
        %v1219 = vsub.f32 1.0, %v1218
        %v1220 = vmul.f32 %v1217, %v1219
        %v1221 = vadd.f32 %v1217, %v1220
        %vm1222 = vweird.f32 %v621
        %vm1223 = vweird.f32 %v1217
        %vm1224 = vmor %vm1222, %vm1223
        %v1225 = vsel %vm1224, %v1217, %v1221
        %v1226 = vand.u32 2147483647, %v621
        %vm1227 = vcmp.eq.f32.partialorder %v1226, 8.507059e+37
        %v1228 = vand.u32 %v621, 2147483648
        %v1229 = vor.u32 1.1754944e-38, %v1228
        %v1230 = vsel %vm1227, %v1229, %v1225
        %v1231 = vmul.f32 1.0, %v1230
        %v1232 = vrcp.pop %v622
        %v1233 = vmul.f32 %v622, %v1232
        %v1234 = vsub.f32 1.0, %v1233
        %v1235 = vmul.f32 %v1232, %v1234
        %v1236 = vadd.f32 %v1232, %v1235
        %vm1237 = vweird.f32 %v622
        %vm1238 = vweird.f32 %v1232
        %vm1239 = vmor %vm1237, %vm1238
        %v1240 = vsel %vm1239, %v1232, %v1236
        %v1241 = vand.u32 2147483647, %v622
        %vm1242 = vcmp.eq.f32.partialorder %v1241, 8.507059e+37
        %v1243 = vand.u32 %v622, 2147483648
        %v1244 = vor.u32 1.1754944e-38, %v1243
        %v1245 = vsel %vm1242, %v1244, %v1240
        %v1246 = vmul.f32 1.0, %v1245
        %v1247 = vrcp.pop %v623
        %v1248 = vmul.f32 %v623, %v1247
        %v1249 = vsub.f32 1.0, %v1248
        %v1250 = vmul.f32 %v1247, %v1249
        %v1251 = vadd.f32 %v1247, %v1250
        %vm1252 = vweird.f32 %v623
        %vm1253 = vweird.f32 %v1247
        %vm1254 = vmor %vm1252, %vm1253
        %v1255 = vsel %vm1254, %v1247, %v1251
        %v1256 = vand.u32 2147483647, %v623
        %vm1257 = vcmp.eq.f32.partialorder %v1256, 8.507059e+37
        %v1258 = vand.u32 %v623, 2147483648
        %v1259 = vor.u32 1.1754944e-38, %v1258
        %v1260 = vsel %vm1257, %v1259, %v1255
        %v1261 = vmul.f32 1.0, %v1260
        %v1262 = vrcp.pop %v624
        %v1263 = vmul.f32 %v624, %v1262
        %v1264 = vsub.f32 1.0, %v1263
        %v1265 = vmul.f32 %v1262, %v1264
        %v1266 = vadd.f32 %v1262, %v1265
        %vm1267 = vweird.f32 %v624
        %vm1268 = vweird.f32 %v1262
        %vm1269 = vmor %vm1267, %vm1268
        %v1270 = vsel %vm1269, %v1262, %v1266
        %v1271 = vand.u32 2147483647, %v624
        %vm1272 = vcmp.eq.f32.partialorder %v1271, 8.507059e+37
        %v1273 = vand.u32 %v624, 2147483648
        %v1274 = vor.u32 1.1754944e-38, %v1273
        %v1275 = vsel %vm1272, %v1274, %v1270
        %v1276 = vmul.f32 1.0, %v1275
        %v1277 = vrcp.pop %v625
        %v1278 = vmul.f32 %v625, %v1277
        %v1279 = vsub.f32 1.0, %v1278
        %v1280 = vmul.f32 %v1277, %v1279
        %v1281 = vadd.f32 %v1277, %v1280
        %vm1282 = vweird.f32 %v625
        %vm1283 = vweird.f32 %v1277
        %vm1284 = vmor %vm1282, %vm1283
        %v1285 = vsel %vm1284, %v1277, %v1281
        %v1286 = vand.u32 2147483647, %v625
        %vm1287 = vcmp.eq.f32.partialorder %v1286, 8.507059e+37
        %v1288 = vand.u32 %v625, 2147483648
        %v1289 = vor.u32 1.1754944e-38, %v1288
        %v1290 = vsel %vm1287, %v1289, %v1285
        %v1291 = vmul.f32 1.0, %v1290
        %v1292 = vrcp.pop %v626
        %v1293 = vmul.f32 %v626, %v1292
        %v1294 = vsub.f32 1.0, %v1293
        %v1295 = vmul.f32 %v1292, %v1294
        %v1296 = vadd.f32 %v1292, %v1295
        %vm1297 = vweird.f32 %v626
        %vm1298 = vweird.f32 %v1292
        %vm1299 = vmor %vm1297, %vm1298
        %v1300 = vsel %vm1299, %v1292, %v1296
        %v1301 = vand.u32 2147483647, %v626
        %vm1302 = vcmp.eq.f32.partialorder %v1301, 8.507059e+37
        %v1303 = vand.u32 %v626, 2147483648
        %v1304 = vor.u32 1.1754944e-38, %v1303
        %v1305 = vsel %vm1302, %v1304, %v1300
        %v1306 = vmul.f32 1.0, %v1305
        %v1307 = vrcp.pop %v627
        %v1308 = vmul.f32 %v627, %v1307
        %v1309 = vsub.f32 1.0, %v1308
        %v1310 = vmul.f32 %v1307, %v1309
        %v1311 = vadd.f32 %v1307, %v1310
        %vm1312 = vweird.f32 %v627
        %vm1313 = vweird.f32 %v1307
        %vm1314 = vmor %vm1312, %vm1313
        %v1315 = vsel %vm1314, %v1307, %v1311
        %v1316 = vand.u32 2147483647, %v627
        %vm1317 = vcmp.eq.f32.partialorder %v1316, 8.507059e+37
        %v1318 = vand.u32 %v627, 2147483648
        %v1319 = vor.u32 1.1754944e-38, %v1318
        %v1320 = vsel %vm1317, %v1319, %v1315
        %v1321 = vmul.f32 1.0, %v1320
        %v1322 = vrcp.pop %v628
        %v1323 = vmul.f32 %v628, %v1322
        %v1324 = vsub.f32 1.0, %v1323
        %v1325 = vmul.f32 %v1322, %v1324
        %v1326 = vadd.f32 %v1322, %v1325
        %vm1327 = vweird.f32 %v628
        %vm1328 = vweird.f32 %v1322
        %vm1329 = vmor %vm1327, %vm1328
        %v1330 = vsel %vm1329, %v1322, %v1326
        %v1331 = vand.u32 2147483647, %v628
        %vm1332 = vcmp.eq.f32.partialorder %v1331, 8.507059e+37
        %v1333 = vand.u32 %v628, 2147483648
        %v1334 = vor.u32 1.1754944e-38, %v1333
        %v1335 = vsel %vm1332, %v1334, %v1330
        %v1336 = vmul.f32 1.0, %v1335
        %v1337 = vrcp.pop %v629
        %v1338 = vmul.f32 %v629, %v1337
        %v1339 = vsub.f32 1.0, %v1338
        %v1340 = vmul.f32 %v1337, %v1339
        %v1341 = vadd.f32 %v1337, %v1340
        %vm1342 = vweird.f32 %v629
        %vm1343 = vweird.f32 %v1337
        %vm1344 = vmor %vm1342, %vm1343
        %v1345 = vsel %vm1344, %v1337, %v1341
        %v1346 = vand.u32 2147483647, %v629
        %vm1347 = vcmp.eq.f32.partialorder %v1346, 8.507059e+37
        %v1348 = vand.u32 %v629, 2147483648
        %v1349 = vor.u32 1.1754944e-38, %v1348
        %v1350 = vsel %vm1347, %v1349, %v1345
        %v1351 = vmul.f32 1.0, %v1350
        %v1352 = vrcp.pop %v630
        %v1353 = vmul.f32 %v630, %v1352
        %v1354 = vsub.f32 1.0, %v1353
        %v1355 = vmul.f32 %v1352, %v1354
        %v1356 = vadd.f32 %v1352, %v1355
        %vm1357 = vweird.f32 %v630
        %vm1358 = vweird.f32 %v1352
        %vm1359 = vmor %vm1357, %vm1358
        %v1360 = vsel %vm1359, %v1352, %v1356
        %v1361 = vand.u32 2147483647, %v630
        %vm1362 = vcmp.eq.f32.partialorder %v1361, 8.507059e+37
        %v1363 = vand.u32 %v630, 2147483648
        %v1364 = vor.u32 1.1754944e-38, %v1363
        %v1365 = vsel %vm1362, %v1364, %v1360
        %v1366 = vmul.f32 1.0, %v1365
        %v1367 = vrcp.pop %v631
        %v1368 = vmul.f32 %v631, %v1367
        %v1369 = vsub.f32 1.0, %v1368
        %v1370 = vmul.f32 %v1367, %v1369
        %v1371 = vadd.f32 %v1367, %v1370
        %vm1372 = vweird.f32 %v631
        %vm1373 = vweird.f32 %v1367
        %vm1374 = vmor %vm1372, %vm1373
        %v1375 = vsel %vm1374, %v1367, %v1371
        %v1376 = vand.u32 2147483647, %v631
        %vm1377 = vcmp.eq.f32.partialorder %v1376, 8.507059e+37
        %v1378 = vand.u32 %v631, 2147483648
        %v1379 = vor.u32 1.1754944e-38, %v1378
        %v1380 = vsel %vm1377, %v1379, %v1375
        %v1381 = vmul.f32 1.0, %v1380
        %v1382 = vrcp.pop %v632
        %v1383 = vmul.f32 %v632, %v1382
        %v1384 = vsub.f32 1.0, %v1383
        %v1385 = vmul.f32 %v1382, %v1384
        %v1386 = vadd.f32 %v1382, %v1385
        %vm1387 = vweird.f32 %v632
        %vm1388 = vweird.f32 %v1382
        %vm1389 = vmor %vm1387, %vm1388
        %v1390 = vsel %vm1389, %v1382, %v1386
        %v1391 = vand.u32 2147483647, %v632
        %vm1392 = vcmp.eq.f32.partialorder %v1391, 8.507059e+37
        %v1393 = vand.u32 %v632, 2147483648
        %v1394 = vor.u32 1.1754944e-38, %v1393
        %v1395 = vsel %vm1392, %v1394, %v1390
        %v1396 = vmul.f32 1.0, %v1395
        %v1397 = vrcp.pop %v633
        %v1398 = vmul.f32 %v633, %v1397
        %v1399 = vsub.f32 1.0, %v1398
        %v1400 = vmul.f32 %v1397, %v1399
        %v1401 = vadd.f32 %v1397, %v1400
        %vm1402 = vweird.f32 %v633
        %vm1403 = vweird.f32 %v1397
        %vm1404 = vmor %vm1402, %vm1403
        %v1405 = vsel %vm1404, %v1397, %v1401
        %v1406 = vand.u32 2147483647, %v633
        %vm1407 = vcmp.eq.f32.partialorder %v1406, 8.507059e+37
        %v1408 = vand.u32 %v633, 2147483648
        %v1409 = vor.u32 1.1754944e-38, %v1408
        %v1410 = vsel %vm1407, %v1409, %v1405
        %v1411 = vmul.f32 1.0, %v1410
        %v1412 = vrcp.pop %v634
        %v1413 = vmul.f32 %v634, %v1412
        %v1414 = vsub.f32 1.0, %v1413
        %v1415 = vmul.f32 %v1412, %v1414
        %v1416 = vadd.f32 %v1412, %v1415
        %vm1417 = vweird.f32 %v634
        %vm1418 = vweird.f32 %v1412
        %vm1419 = vmor %vm1417, %vm1418
        %v1420 = vsel %vm1419, %v1412, %v1416
        %v1421 = vand.u32 2147483647, %v634
        %vm1422 = vcmp.eq.f32.partialorder %v1421, 8.507059e+37
        %v1423 = vand.u32 %v634, 2147483648
        %v1424 = vor.u32 1.1754944e-38, %v1423
        %v1425 = vsel %vm1422, %v1424, %v1420
        %v1426 = vmul.f32 1.0, %v1425
        %v1427 = vrcp.pop %v635
        %v1428 = vmul.f32 %v635, %v1427
        %v1429 = vsub.f32 1.0, %v1428
        %v1430 = vmul.f32 %v1427, %v1429
        %v1431 = vadd.f32 %v1427, %v1430
        %vm1432 = vweird.f32 %v635
        %vm1433 = vweird.f32 %v1427
        %vm1434 = vmor %vm1432, %vm1433
        %v1435 = vsel %vm1434, %v1427, %v1431
        %v1436 = vand.u32 2147483647, %v635
        %vm1437 = vcmp.eq.f32.partialorder %v1436, 8.507059e+37
        %v1438 = vand.u32 %v635, 2147483648
        %v1439 = vor.u32 1.1754944e-38, %v1438
        %v1440 = vsel %vm1437, %v1439, %v1435
        %v1441 = vmul.f32 1.0, %v1440
        %v1442 = vrcp.pop %v636
        %v1443 = vmul.f32 %v636, %v1442
        %v1444 = vsub.f32 1.0, %v1443
        %v1445 = vmul.f32 %v1442, %v1444
        %v1446 = vadd.f32 %v1442, %v1445
        %vm1447 = vweird.f32 %v636
        %vm1448 = vweird.f32 %v1442
        %vm1449 = vmor %vm1447, %vm1448
        %v1450 = vsel %vm1449, %v1442, %v1446
        %v1451 = vand.u32 2147483647, %v636
        %vm1452 = vcmp.eq.f32.partialorder %v1451, 8.507059e+37
        %v1453 = vand.u32 %v636, 2147483648
        %v1454 = vor.u32 1.1754944e-38, %v1453
        %v1455 = vsel %vm1452, %v1454, %v1450
        %v1456 = vmul.f32 1.0, %v1455
        %v1457 = vrcp.pop %v637
        %v1458 = vmul.f32 %v637, %v1457
        %v1459 = vsub.f32 1.0, %v1458
        %v1460 = vmul.f32 %v1457, %v1459
        %v1461 = vadd.f32 %v1457, %v1460
        %vm1462 = vweird.f32 %v637
        %vm1463 = vweird.f32 %v1457
        %vm1464 = vmor %vm1462, %vm1463
        %v1465 = vsel %vm1464, %v1457, %v1461
        %v1466 = vand.u32 2147483647, %v637
        %vm1467 = vcmp.eq.f32.partialorder %v1466, 8.507059e+37
        %v1468 = vand.u32 %v637, 2147483648
        %v1469 = vor.u32 1.1754944e-38, %v1468
        %v1470 = vsel %vm1467, %v1469, %v1465
        %v1471 = vmul.f32 1.0, %v1470
        %v1472 = vrcp.pop %v638
        %v1473 = vmul.f32 %v638, %v1472
        %v1474 = vsub.f32 1.0, %v1473
        %v1475 = vmul.f32 %v1472, %v1474
        %v1476 = vadd.f32 %v1472, %v1475
        %vm1477 = vweird.f32 %v638
        %vm1478 = vweird.f32 %v1472
        %vm1479 = vmor %vm1477, %vm1478
        %v1480 = vsel %vm1479, %v1472, %v1476
        %v1481 = vand.u32 2147483647, %v638
        %vm1482 = vcmp.eq.f32.partialorder %v1481, 8.507059e+37
        %v1483 = vand.u32 %v638, 2147483648
        %v1484 = vor.u32 1.1754944e-38, %v1483
        %v1485 = vsel %vm1482, %v1484, %v1480
        %v1486 = vmul.f32 1.0, %v1485
        %v1487 = vrcp.pop %v639
        %v1488 = vmul.f32 %v639, %v1487
        %v1489 = vsub.f32 1.0, %v1488
        %v1490 = vmul.f32 %v1487, %v1489
        %v1491 = vadd.f32 %v1487, %v1490
        %vm1492 = vweird.f32 %v639
        %vm1493 = vweird.f32 %v1487
        %vm1494 = vmor %vm1492, %vm1493
        %v1495 = vsel %vm1494, %v1487, %v1491
        %v1496 = vand.u32 2147483647, %v639
        %vm1497 = vcmp.eq.f32.partialorder %v1496, 8.507059e+37
        %v1498 = vand.u32 %v639, 2147483648
        %v1499 = vor.u32 1.1754944e-38, %v1498
        %v1500 = vsel %vm1497, %v1499, %v1495
        %v1501 = vmul.f32 1.0, %v1500
        %v1502 = vrcp.pop %v640
        %v1503 = vmul.f32 %v640, %v1502
        %v1504 = vsub.f32 1.0, %v1503
        %v1505 = vmul.f32 %v1502, %v1504
        %v1506 = vadd.f32 %v1502, %v1505
        %vm1507 = vweird.f32 %v640
        %vm1508 = vweird.f32 %v1502
        %vm1509 = vmor %vm1507, %vm1508
        %v1510 = vsel %vm1509, %v1502, %v1506
        %v1511 = vand.u32 2147483647, %v640
        %vm1512 = vcmp.eq.f32.partialorder %v1511, 8.507059e+37
        %v1513 = vand.u32 %v640, 2147483648
        %v1514 = vor.u32 1.1754944e-38, %v1513
        %v1515 = vsel %vm1512, %v1514, %v1510
        %v1516 = vmul.f32 1.0, %v1515
        %v1517 = vrcp.pop %v641
        %v1518 = vmul.f32 %v641, %v1517
        %v1519 = vsub.f32 1.0, %v1518
        %v1520 = vmul.f32 %v1517, %v1519
        %v1521 = vadd.f32 %v1517, %v1520
        %vm1522 = vweird.f32 %v641
        %vm1523 = vweird.f32 %v1517
        %vm1524 = vmor %vm1522, %vm1523
        %v1525 = vsel %vm1524, %v1517, %v1521
        %v1526 = vand.u32 2147483647, %v641
        %vm1527 = vcmp.eq.f32.partialorder %v1526, 8.507059e+37
        %v1528 = vand.u32 %v641, 2147483648
        %v1529 = vor.u32 1.1754944e-38, %v1528
        %v1530 = vsel %vm1527, %v1529, %v1525
        %v1531 = vmul.f32 1.0, %v1530
        %v1532 = vrcp.pop %v642
        %v1533 = vmul.f32 %v642, %v1532
        %v1534 = vsub.f32 1.0, %v1533
        %v1535 = vmul.f32 %v1532, %v1534
        %v1536 = vadd.f32 %v1532, %v1535
        %vm1537 = vweird.f32 %v642
        %vm1538 = vweird.f32 %v1532
        %vm1539 = vmor %vm1537, %vm1538
        %v1540 = vsel %vm1539, %v1532, %v1536
        %v1541 = vand.u32 2147483647, %v642
        %vm1542 = vcmp.eq.f32.partialorder %v1541, 8.507059e+37
        %v1543 = vand.u32 %v642, 2147483648
        %v1544 = vor.u32 1.1754944e-38, %v1543
        %v1545 = vsel %vm1542, %v1544, %v1540
        %v1546 = vmul.f32 1.0, %v1545
        %v1547 = vrcp.pop %v643
        %v1548 = vmul.f32 %v643, %v1547
        %v1549 = vsub.f32 1.0, %v1548
        %v1550 = vmul.f32 %v1547, %v1549
        %v1551 = vadd.f32 %v1547, %v1550
        %vm1552 = vweird.f32 %v643
        %vm1553 = vweird.f32 %v1547
        %vm1554 = vmor %vm1552, %vm1553
        %v1555 = vsel %vm1554, %v1547, %v1551
        %v1556 = vand.u32 2147483647, %v643
        %vm1557 = vcmp.eq.f32.partialorder %v1556, 8.507059e+37
        %v1558 = vand.u32 %v643, 2147483648
        %v1559 = vor.u32 1.1754944e-38, %v1558
        %v1560 = vsel %vm1557, %v1559, %v1555
        %v1561 = vmul.f32 1.0, %v1560
        %v1562 = vrcp.pop %v644
        %v1563 = vmul.f32 %v644, %v1562
        %v1564 = vsub.f32 1.0, %v1563
        %v1565 = vmul.f32 %v1562, %v1564
        %v1566 = vadd.f32 %v1562, %v1565
        %vm1567 = vweird.f32 %v644
        %vm1568 = vweird.f32 %v1562
        %vm1569 = vmor %vm1567, %vm1568
        %v1570 = vsel %vm1569, %v1562, %v1566
        %v1571 = vand.u32 2147483647, %v644
        %vm1572 = vcmp.eq.f32.partialorder %v1571, 8.507059e+37
        %v1573 = vand.u32 %v644, 2147483648
        %v1574 = vor.u32 1.1754944e-38, %v1573
        %v1575 = vsel %vm1572, %v1574, %v1570
        %v1576 = vmul.f32 1.0, %v1575
        %v1577 = vrcp.pop %v645
        %v1578 = vmul.f32 %v645, %v1577
        %v1579 = vsub.f32 1.0, %v1578
        %v1580 = vmul.f32 %v1577, %v1579
        %v1581 = vadd.f32 %v1577, %v1580
        %vm1582 = vweird.f32 %v645
        %vm1583 = vweird.f32 %v1577
        %vm1584 = vmor %vm1582, %vm1583
        %v1585 = vsel %vm1584, %v1577, %v1581
        %v1586 = vand.u32 2147483647, %v645
        %vm1587 = vcmp.eq.f32.partialorder %v1586, 8.507059e+37
        %v1588 = vand.u32 %v645, 2147483648
        %v1589 = vor.u32 1.1754944e-38, %v1588
        %v1590 = vsel %vm1587, %v1589, %v1585
        %v1591 = vmul.f32 1.0, %v1590
        %v1592 = vrcp.pop %v646
        %v1593 = vmul.f32 %v646, %v1592
        %v1594 = vsub.f32 1.0, %v1593
        %v1595 = vmul.f32 %v1592, %v1594
        %v1596 = vadd.f32 %v1592, %v1595
        %vm1597 = vweird.f32 %v646
        %vm1598 = vweird.f32 %v1592
        %vm1599 = vmor %vm1597, %vm1598
        %v1600 = vsel %vm1599, %v1592, %v1596
        %v1601 = vand.u32 2147483647, %v646
        %vm1602 = vcmp.eq.f32.partialorder %v1601, 8.507059e+37
        %v1603 = vand.u32 %v646, 2147483648
        %v1604 = vor.u32 1.1754944e-38, %v1603
        %v1605 = vsel %vm1602, %v1604, %v1600
        %v1606 = vmul.f32 1.0, %v1605
        %vm1671 = vcmask 1045504
        %v1672 = vrot.slane %v661, 2
        %v1673 = vrot.slane %v691, 2
        %v1674 = vsel %vm1671, %v1672, %v1673
        %v1675 = vrot.slane %v676, 2
        %v1676 = vrot.slane %v706, 2
        %v1677 = vsel %vm1671, %v1675, %v1676
        %v1678 = vrot.slane %v721, 2
        %v1679 = vsel %vm1671, %v1673, %v1678
        %v1680 = vrot.slane %v736, 2
        %v1681 = vsel %vm1671, %v1676, %v1680
        %v1682 = vrot.slane %v751, 2
        %v1683 = vsel %vm1671, %v1678, %v1682
        %v1684 = vrot.slane %v766, 2
        %v1685 = vsel %vm1671, %v1680, %v1684
        %v1686 = vrot.slane %v781, 2
        %v1687 = vsel %vm1671, %v1682, %v1686
        %v1688 = vrot.slane %v796, 2
        %v1689 = vsel %vm1671, %v1684, %v1688
        %v1690 = vrot.slane %v811, 2
        %v1691 = vsel %vm1671, %v1686, %v1690
        %v1692 = vrot.slane %v826, 2
        %v1693 = vsel %vm1671, %v1688, %v1692
        %v1694 = vrot.slane %v841, 2
        %v1695 = vsel %vm1671, %v1690, %v1694
        %v1696 = vrot.slane %v856, 2
        %v1697 = vsel %vm1671, %v1692, %v1696
        %v1698 = vrot.slane %v871, 2
        %v1699 = vsel %vm1671, %v1694, %v1698
        %v1700 = vrot.slane %v886, 2
        %v1701 = vsel %vm1671, %v1696, %v1700
        %v1702 = vrot.slane %v901, 2
        %v1703 = vsel %vm1671, %v1698, %v1702
        %v1704 = vrot.slane %v916, 2
        %v1705 = vsel %vm1671, %v1700, %v1704
        %v1706 = vrot.slane %v931, 2
        %v1707 = vsel %vm1671, %v1702, %v1706
        %v1708 = vrot.slane %v946, 2
        %v1709 = vsel %vm1671, %v1704, %v1708
        %v1710 = vrot.slane %v961, 2
        %v1711 = vsel %vm1671, %v1706, %v1710
        %v1712 = vrot.slane %v976, 2
        %v1713 = vsel %vm1671, %v1708, %v1712
        %v1714 = vrot.slane %v991, 2
        %v1715 = vsel %vm1671, %v1710, %v1714
        %v1716 = vrot.slane %v1006, 2
        %v1717 = vsel %vm1671, %v1712, %v1716
        %v1718 = vrot.slane %v1021, 2
        %v1719 = vsel %vm1671, %v1714, %v1718
        %v1720 = vrot.slane %v1036, 2
        %v1721 = vsel %vm1671, %v1716, %v1720
        %v1722 = vrot.slane %v1051, 2
        %v1723 = vsel %vm1671, %v1718, %v1722
        %v1724 = vrot.slane %v1066, 2
        %v1725 = vsel %vm1671, %v1720, %v1724
        %v1726 = vrot.slane %v1081, 2
        %v1727 = vsel %vm1671, %v1722, %v1726
        %v1728 = vrot.slane %v1096, 2
        %v1729 = vsel %vm1671, %v1724, %v1728
        %v1730 = vrot.slane %v1111, 2
        %v1731 = vsel %vm1671, %v1726, %v1730
        %v1732 = vrot.slane %v1126, 2
        %v1733 = vsel %vm1671, %v1728, %v1732
        %v1734 = vrot.slane %v1141, 2
        %v1735 = vsel %vm1671, %v1730, %v1734
        %v1736 = vrot.slane %v1156, 2
        %v1737 = vsel %vm1671, %v1732, %v1736
        %v1738 = vrot.slane %v1171, 2
        %v1739 = vsel %vm1671, %v1734, %v1738
        %v1740 = vrot.slane %v1186, 2
        %v1741 = vsel %vm1671, %v1736, %v1740
        %v1742 = vrot.slane %v1201, 2
        %v1743 = vsel %vm1671, %v1738, %v1742
        %v1744 = vrot.slane %v1216, 2
        %v1745 = vsel %vm1671, %v1740, %v1744
        %v1746 = vrot.slane %v1231, 2
        %v1747 = vsel %vm1671, %v1742, %v1746
        %v1748 = vrot.slane %v1246, 2
        %v1749 = vsel %vm1671, %v1744, %v1748
        %v1750 = vrot.slane %v1261, 2
        %v1751 = vsel %vm1671, %v1746, %v1750
        %v1752 = vrot.slane %v1276, 2
        %v1753 = vsel %vm1671, %v1748, %v1752
        %v1754 = vrot.slane %v1291, 2
        %v1755 = vsel %vm1671, %v1750, %v1754
        %v1756 = vrot.slane %v1306, 2
        %v1757 = vsel %vm1671, %v1752, %v1756
        %v1758 = vrot.slane %v1321, 2
        %v1759 = vsel %vm1671, %v1754, %v1758
        %v1760 = vrot.slane %v1336, 2
        %v1761 = vsel %vm1671, %v1756, %v1760
        %v1762 = vrot.slane %v1351, 2
        %v1763 = vsel %vm1671, %v1758, %v1762
        %v1764 = vrot.slane %v1366, 2
        %v1765 = vsel %vm1671, %v1760, %v1764
        %v1766 = vrot.slane %v1381, 2
        %v1767 = vsel %vm1671, %v1762, %v1766
        %v1768 = vrot.slane %v1396, 2
        %v1769 = vsel %vm1671, %v1764, %v1768
        %v1770 = vrot.slane %v1411, 2
        %v1771 = vsel %vm1671, %v1766, %v1770
        %v1772 = vrot.slane %v1426, 2
        %v1773 = vsel %vm1671, %v1768, %v1772
        %v1774 = vrot.slane %v1441, 2
        %v1775 = vsel %vm1671, %v1770, %v1774
        %v1776 = vrot.slane %v1456, 2
        %v1777 = vsel %vm1671, %v1772, %v1776
        %v1778 = vrot.slane %v1471, 2
        %v1779 = vsel %vm1671, %v1774, %v1778
        %v1780 = vrot.slane %v1486, 2
        %v1781 = vsel %vm1671, %v1776, %v1780
        %v1782 = vrot.slane %v1501, 2
        %v1783 = vsel %vm1671, %v1778, %v1782
        %v1784 = vrot.slane %v1516, 2
        %v1785 = vsel %vm1671, %v1780, %v1784
        %v1786 = vrot.slane %v1531, 2
        %v1787 = vsel %vm1671, %v1782, %v1786
        %v1788 = vrot.slane %v1546, 2
        %v1789 = vsel %vm1671, %v1784, %v1788
        %v1790 = vrot.slane %v1561, 2
        %v1791 = vsel %vm1671, %v1786, %v1790
        %v1792 = vrot.slane %v1576, 2
        %v1793 = vsel %vm1671, %v1788, %v1792
        %v1794 = vrot.slane %v1591, 2
        %v1795 = vsel %vm1671, %v1790, %v1794
        %v1796 = vrot.slane %v1606, 2
        %v1797 = vsel %vm1671, %v1792, %v1796
        %1798 = vrot.lane.b32.xlu0 %v1674, 126
        %v1799 = vpop.permute.xlu0 %1798
        %1800 = vrot.lane.b32.xlu0 %v1677, 126
        %v1801 = vpop.permute.xlu0 %1800
        %1802 = vrot.lane.b32.xlu0 %v1679, 126
        %v1803 = vpop.permute.xlu0 %1802
        %1804 = vrot.lane.b32.xlu0 %v1681, 126
        %v1805 = vpop.permute.xlu0 %1804
        %1806 = vrot.lane.b32.xlu0 %v1683, 126
        %v1807 = vpop.permute.xlu0 %1806
        %1808 = vrot.lane.b32.xlu0 %v1685, 126
        %v1809 = vpop.permute.xlu0 %1808
        %1810 = vrot.lane.b32.xlu0 %v1687, 126
        %v1811 = vpop.permute.xlu0 %1810
        %1812 = vrot.lane.b32.xlu0 %v1689, 126
        %v1813 = vpop.permute.xlu0 %1812
        %1814 = vrot.lane.b32.xlu0 %v1691, 126
        %v1815 = vpop.permute.xlu0 %1814
        %1816 = vrot.lane.b32.xlu0 %v1693, 126
        %v1817 = vpop.permute.xlu0 %1816
        %1818 = vrot.lane.b32.xlu0 %v1695, 126
        %v1819 = vpop.permute.xlu0 %1818
        %1820 = vrot.lane.b32.xlu0 %v1697, 126
        %v1821 = vpop.permute.xlu0 %1820
        %1822 = vrot.lane.b32.xlu0 %v1699, 126
        %v1823 = vpop.permute.xlu0 %1822
        %1824 = vrot.lane.b32.xlu0 %v1701, 126
        %v1825 = vpop.permute.xlu0 %1824
        %1826 = vrot.lane.b32.xlu0 %v1703, 126
        %v1827 = vpop.permute.xlu0 %1826
        %1828 = vrot.lane.b32.xlu0 %v1705, 126
        %v1829 = vpop.permute.xlu0 %1828
        %1830 = vrot.lane.b32.xlu0 %v1707, 126
        %v1831 = vpop.permute.xlu0 %1830
        %1832 = vrot.lane.b32.xlu0 %v1709, 126
        %v1833 = vpop.permute.xlu0 %1832
        %1834 = vrot.lane.b32.xlu0 %v1711, 126
        %v1835 = vpop.permute.xlu0 %1834
        %1836 = vrot.lane.b32.xlu0 %v1713, 126
        %v1837 = vpop.permute.xlu0 %1836
        %1838 = vrot.lane.b32.xlu0 %v1715, 126
        %v1839 = vpop.permute.xlu0 %1838
        %1840 = vrot.lane.b32.xlu0 %v1717, 126
        %v1841 = vpop.permute.xlu0 %1840
        %1842 = vrot.lane.b32.xlu0 %v1719, 126
        %v1843 = vpop.permute.xlu0 %1842
        %1844 = vrot.lane.b32.xlu0 %v1721, 126
        %v1845 = vpop.permute.xlu0 %1844
        %1846 = vrot.lane.b32.xlu0 %v1723, 126
        %v1847 = vpop.permute.xlu0 %1846
        %1848 = vrot.lane.b32.xlu0 %v1725, 126
        %v1849 = vpop.permute.xlu0 %1848
        %1850 = vrot.lane.b32.xlu0 %v1727, 126
        %v1851 = vpop.permute.xlu0 %1850
        %1852 = vrot.lane.b32.xlu0 %v1729, 126
        %v1853 = vpop.permute.xlu0 %1852
        %1854 = vrot.lane.b32.xlu0 %v1731, 126
        %v1855 = vpop.permute.xlu0 %1854
        %1856 = vrot.lane.b32.xlu0 %v1733, 126
        %v1857 = vpop.permute.xlu0 %1856
        %1858 = vrot.lane.b32.xlu0 %v1735, 126
        %v1859 = vpop.permute.xlu0 %1858
        %1860 = vrot.lane.b32.xlu0 %v1737, 126
        %v1861 = vpop.permute.xlu0 %1860
        %1862 = vrot.lane.b32.xlu0 %v1739, 126
        %v1863 = vpop.permute.xlu0 %1862
        %1864 = vrot.lane.b32.xlu0 %v1741, 126
        %v1865 = vpop.permute.xlu0 %1864
        %1866 = vrot.lane.b32.xlu0 %v1743, 126
        %v1867 = vpop.permute.xlu0 %1866
        %1868 = vrot.lane.b32.xlu0 %v1745, 126
        %v1869 = vpop.permute.xlu0 %1868
        %1870 = vrot.lane.b32.xlu0 %v1747, 126
        %v1871 = vpop.permute.xlu0 %1870
        %1872 = vrot.lane.b32.xlu0 %v1749, 126
        %v1873 = vpop.permute.xlu0 %1872
        %1874 = vrot.lane.b32.xlu0 %v1751, 126
        %v1875 = vpop.permute.xlu0 %1874
        %1876 = vrot.lane.b32.xlu0 %v1753, 126
        %v1877 = vpop.permute.xlu0 %1876
        %1878 = vrot.lane.b32.xlu0 %v1755, 126
        %v1879 = vpop.permute.xlu0 %1878
        %1880 = vrot.lane.b32.xlu0 %v1757, 126
        %v1881 = vpop.permute.xlu0 %1880
        %1882 = vrot.lane.b32.xlu0 %v1759, 126
        %v1883 = vpop.permute.xlu0 %1882
        %1884 = vrot.lane.b32.xlu0 %v1761, 126
        %v1885 = vpop.permute.xlu0 %1884
        %1886 = vrot.lane.b32.xlu0 %v1763, 126
        %v1887 = vpop.permute.xlu0 %1886
        %1888 = vrot.lane.b32.xlu0 %v1765, 126
        %v1889 = vpop.permute.xlu0 %1888
        %1890 = vrot.lane.b32.xlu0 %v1767, 126
        %v1891 = vpop.permute.xlu0 %1890
        %1892 = vrot.lane.b32.xlu0 %v1769, 126
        %v1893 = vpop.permute.xlu0 %1892
        %1894 = vrot.lane.b32.xlu0 %v1771, 126
        %v1895 = vpop.permute.xlu0 %1894
        %1896 = vrot.lane.b32.xlu0 %v1773, 126
        %v1897 = vpop.permute.xlu0 %1896
        %1898 = vrot.lane.b32.xlu0 %v1775, 126
        %v1899 = vpop.permute.xlu0 %1898
        %1900 = vrot.lane.b32.xlu0 %v1777, 126
        %v1901 = vpop.permute.xlu0 %1900
        %1902 = vrot.lane.b32.xlu0 %v1779, 126
        %v1903 = vpop.permute.xlu0 %1902
        %1904 = vrot.lane.b32.xlu0 %v1781, 126
        %v1905 = vpop.permute.xlu0 %1904
        %1906 = vrot.lane.b32.xlu0 %v1783, 126
        %v1907 = vpop.permute.xlu0 %1906
        %1908 = vrot.lane.b32.xlu0 %v1785, 126
        %v1909 = vpop.permute.xlu0 %1908
        %1910 = vrot.lane.b32.xlu0 %v1787, 126
        %v1911 = vpop.permute.xlu0 %1910
        %1912 = vrot.lane.b32.xlu0 %v1789, 126
        %v1913 = vpop.permute.xlu0 %1912
        %1914 = vrot.lane.b32.xlu0 %v1791, 126
        %v1915 = vpop.permute.xlu0 %1914
        %1916 = vrot.lane.b32.xlu0 %v1793, 126
        %v1917 = vpop.permute.xlu0 %1916
        %1918 = vrot.lane.b32.xlu0 %v1795, 126
        %v1919 = vpop.permute.xlu0 %1918
        %1920 = vrot.lane.b32.xlu0 %v1797, 126
        %v1921 = vpop.permute.xlu0 %1920
        %1922 = vrot.lane.b32.xlu0 %v1794, 126
        %v1923 = vpop.permute.xlu0 %1922
        %1924 = vrot.lane.b32.xlu0 %v1796, 126
        %v1925 = vpop.permute.xlu0 %1924
        %vm1926 = vcmask 1031168
        %v1927 = vsel %vm1926, %v1799, %v1801
        %v1928 = vsel %vm1926, %v1803, %v1805
        %v1929 = vsel %vm1926, %v1807, %v1809
        %v1930 = vsel %vm1926, %v1811, %v1813
        %v1931 = vsel %vm1926, %v1815, %v1817
        %v1932 = vsel %vm1926, %v1819, %v1821
        %v1933 = vsel %vm1926, %v1823, %v1825
        %v1934 = vsel %vm1926, %v1827, %v1829
        %v1935 = vsel %vm1926, %v1831, %v1833
        %v1936 = vsel %vm1926, %v1835, %v1837
        %v1937 = vsel %vm1926, %v1839, %v1841
        %v1938 = vsel %vm1926, %v1843, %v1845
        %v1939 = vsel %vm1926, %v1847, %v1849
        %v1940 = vsel %vm1926, %v1851, %v1853
        %v1941 = vsel %vm1926, %v1855, %v1857
        %v1942 = vsel %vm1926, %v1859, %v1861
        %v1943 = vsel %vm1926, %v1863, %v1865
        %v1944 = vsel %vm1926, %v1867, %v1869
        %v1945 = vsel %vm1926, %v1871, %v1873
        %v1946 = vsel %vm1926, %v1875, %v1877
        %v1947 = vsel %vm1926, %v1879, %v1881
        %v1948 = vsel %vm1926, %v1883, %v1885
        %v1949 = vsel %vm1926, %v1887, %v1889
        %v1950 = vsel %vm1926, %v1891, %v1893
        %v1951 = vsel %vm1926, %v1895, %v1897
        %v1952 = vsel %vm1926, %v1899, %v1901
        %v1953 = vsel %vm1926, %v1903, %v1905
        %v1954 = vsel %vm1926, %v1907, %v1909
        %v1955 = vsel %vm1926, %v1911, %v1913
        %v1956 = vsel %vm1926, %v1915, %v1917
        %v1957 = vsel %vm1926, %v1919, %v1921
        %v1958 = vsel %vm1926, %v1923, %v1925
        %2023 = vst [vmem:[%s194] sm:$0xff] %v1927
        %vm2024 = vcmask 1014784
        %2025 = vst.msk [vmem:[%s194 + $0x8] sm:$0xff] %vm2024, %v1801
        %2026 = vst [vmem:[%s194 + $0x10] sm:$0xff] %v1928
        %2027 = vst.msk [vmem:[%s194 + $0x18] sm:$0xff] %vm2024, %v1805
        %2028 = vst [vmem:[%s194 + $0x20] sm:$0xff] %v1929
        %2029 = vst.msk [vmem:[%s194 + $0x28] sm:$0xff] %vm2024, %v1809
        %2030 = vst [vmem:[%s194 + $0x30] sm:$0xff] %v1930
        %2031 = vst.msk [vmem:[%s194 + $0x38] sm:$0xff] %vm2024, %v1813
        %2032 = vst [vmem:[%s194 + $0x40] sm:$0xff] %v1931
        %2033 = vst.msk [vmem:[%s194 + $0x48] sm:$0xff] %vm2024, %v1817
        %2034 = vst [vmem:[%s194 + $0x50] sm:$0xff] %v1932
        %2035 = vst.msk [vmem:[%s194 + $0x58] sm:$0xff] %vm2024, %v1821
        %2036 = vst [vmem:[%s194 + $0x60] sm:$0xff] %v1933
        %2037 = vst.msk [vmem:[%s194 + $0x68] sm:$0xff] %vm2024, %v1825
        %2038 = vst [vmem:[%s194 + $0x70] sm:$0xff] %v1934
        %2039 = vst.msk [vmem:[%s194 + $0x78] sm:$0xff] %vm2024, %v1829
        %2040 = vst [vmem:[%s194 + $0x80] sm:$0xff] %v1935
        %2041 = vst.msk [vmem:[%s194 + $0x88] sm:$0xff] %vm2024, %v1833
        %2042 = vst [vmem:[%s194 + $0x90] sm:$0xff] %v1936
        %2043 = vst.msk [vmem:[%s194 + $0x98] sm:$0xff] %vm2024, %v1837
        %2044 = vst [vmem:[%s194 + $0xa0] sm:$0xff] %v1937
        %2045 = vst.msk [vmem:[%s194 + $0xa8] sm:$0xff] %vm2024, %v1841
        %2046 = vst [vmem:[%s194 + $0xb0] sm:$0xff] %v1938
        %2047 = vst.msk [vmem:[%s194 + $0xb8] sm:$0xff] %vm2024, %v1845
        %2048 = vst [vmem:[%s194 + $0xc0] sm:$0xff] %v1939
        %2049 = vst.msk [vmem:[%s194 + $0xc8] sm:$0xff] %vm2024, %v1849
        %2050 = vst [vmem:[%s194 + $0xd0] sm:$0xff] %v1940
        %2051 = vst.msk [vmem:[%s194 + $0xd8] sm:$0xff] %vm2024, %v1853
        %2052 = vst [vmem:[%s194 + $0xe0] sm:$0xff] %v1941
        %2053 = vst.msk [vmem:[%s194 + $0xe8] sm:$0xff] %vm2024, %v1857
        %2054 = vst [vmem:[%s194 + $0xf0] sm:$0xff] %v1942
        %2055 = vst.msk [vmem:[%s194 + $0xf8] sm:$0xff] %vm2024, %v1861
        %2056 = vst [vmem:[%s194 + $0x100] sm:$0xff] %v1943
        %2057 = vst.msk [vmem:[%s194 + $0x108] sm:$0xff] %vm2024, %v1865
        %2058 = vst [vmem:[%s194 + $0x110] sm:$0xff] %v1944
        %2059 = vst.msk [vmem:[%s194 + $0x118] sm:$0xff] %vm2024, %v1869
        %2060 = vst [vmem:[%s194 + $0x120] sm:$0xff] %v1945
        %2061 = vst.msk [vmem:[%s194 + $0x128] sm:$0xff] %vm2024, %v1873
        %2062 = vst [vmem:[%s194 + $0x130] sm:$0xff] %v1946
        %2063 = vst.msk [vmem:[%s194 + $0x138] sm:$0xff] %vm2024, %v1877
        %2064 = vst [vmem:[%s194 + $0x140] sm:$0xff] %v1947
        %2065 = vst.msk [vmem:[%s194 + $0x148] sm:$0xff] %vm2024, %v1881
        %2066 = vst [vmem:[%s194 + $0x150] sm:$0xff] %v1948
        %2067 = vst.msk [vmem:[%s194 + $0x158] sm:$0xff] %vm2024, %v1885
        %2068 = vst [vmem:[%s194 + $0x160] sm:$0xff] %v1949
        %2069 = vst.msk [vmem:[%s194 + $0x168] sm:$0xff] %vm2024, %v1889
        %2070 = vst [vmem:[%s194 + $0x170] sm:$0xff] %v1950
        %2071 = vst.msk [vmem:[%s194 + $0x178] sm:$0xff] %vm2024, %v1893
        %2072 = vst [vmem:[%s194 + $0x180] sm:$0xff] %v1951
        %2073 = vst.msk [vmem:[%s194 + $0x188] sm:$0xff] %vm2024, %v1897
        %2074 = vst [vmem:[%s194 + $0x190] sm:$0xff] %v1952
        %2075 = vst.msk [vmem:[%s194 + $0x198] sm:$0xff] %vm2024, %v1901
        %2076 = vst [vmem:[%s194 + $0x1a0] sm:$0xff] %v1953
        %2077 = vst.msk [vmem:[%s194 + $0x1a8] sm:$0xff] %vm2024, %v1905
        %2078 = vst [vmem:[%s194 + $0x1b0] sm:$0xff] %v1954
        %2079 = vst.msk [vmem:[%s194 + $0x1b8] sm:$0xff] %vm2024, %v1909
        %2080 = vst [vmem:[%s194 + $0x1c0] sm:$0xff] %v1955
        %2081 = vst.msk [vmem:[%s194 + $0x1c8] sm:$0xff] %vm2024, %v1913
        %2082 = vst [vmem:[%s194 + $0x1d0] sm:$0xff] %v1956
        %2083 = vst.msk [vmem:[%s194 + $0x1d8] sm:$0xff] %vm2024, %v1917
        %2084 = vst [vmem:[%s194 + $0x1e0] sm:$0xff] %v1957
        %2085 = vst.msk [vmem:[%s194 + $0x1e8] sm:$0xff] %vm2024, %v1921
        %2086 = vst [vmem:[%s194 + $0x1f0] sm:$0xf] %v1958
        %vm2087 = vcmask 1010688
        %2088 = vst.msk [vmem:[%s194 + $0x1f8] sm:$0xf] %vm2087, %v1925
        %p2089 = scmp.lt.s32.totalorder %s19, 1
        %s2090 = scalar_select %p2089, %s19, 1
        %s2091 = smul.addr %s2090, 64
        %s2092 = smul.addr %s2091, 8
        %s2093 = scalar_lea.vmem %s3, %s2092
        // Predicated region
        $region37: #{tpu_custom_call.1} parent=31 // pred_check
          %p2094 = pneg %p105
        $region38: #{tpu_custom_call.1} parent=31 // pred_check_branch
          %2096 = sbr.rel (%p2094) target = $region40
        $region39: #{tpu_custom_call.1} parent=31 // pred_region
          _
        $region40: #{tpu_custom_call.1} parent=31 // pred_fallthru
          _
      $region32: #{tpu_custom_call.1} parent=5 // pred_fallthru
        _
      %p2097 = scmp.le.s32.totalorder 2, %s14
      // Predicated region
      $region41: #{tpu_custom_call.1} parent=5 // pred_check
        %p2098 = pneg %p2097
      $region42: #{tpu_custom_call.1} parent=5 // pred_check_branch
        %2100 = sbr.rel (%p2098) target = $region44
      $region43: #{tpu_custom_call.1} parent=5 // pred_region
        %s2101 = ssub.s32 %s14, 2
        // Predicated region
        $region45: #{tpu_custom_call.1} parent=43 // pred_check
          %p2102 = pneg %p111
        $region46: #{tpu_custom_call.1} parent=43 // pred_check_branch
          %2104 = sbr.rel (%p2102) target = $region48
        $region47: #{tpu_custom_call.1} parent=43 // pred_region
          %p2105 = scmp.lt.s32.totalorder %s20, 1
          %s2106 = scalar_select %p2105, %s20, 1
          %s2107 = smul.addr %s2106, 64
          %s2108 = smul.addr %s2107, 8
          %s2109 = scalar_lea.vmem %s3, %s2108
        $region48: #{tpu_custom_call.1} parent=43 // pred_fallthru
          _
      $region44: #{tpu_custom_call.1} parent=5 // pred_fallthru
        _
    $region6: #{tpu_custom_call.1} parent=1 // loop_footer
      %s18 = sadd.s32 1, %s14
    $region7: #{tpu_custom_call.1} parent=1 // loop_footer_branch
      %13 = sbr.rel target = $region3
    $region8: #{tpu_custom_call.1} parent=1 // loop_exit
      _
    %2110 = vsyncpa [#allocation5], 1
    %s2111 = scalar_lea.sflag [#allocation5], 1
    %2112 = vsyncpa %s2111, 1

</llo_original>
